<compile_context>
chip_gen: v7x
topology: tpu7x:2x2x1
jax: 0.10.0
libtpu: 0.0.40
codegen_flags: <defaults>
</compile_context>

<pallas_src>
import functools

import numpy as np
import jax
import jax.numpy as jnp
from jax.experimental import pallas as pl
from jax.experimental.pallas import tpu as pltpu


def _round_up(x, m):
    return ((x + m - 1) // m) * m


def _cdiv(a, b):
    return -(-a // b)


def _choose_blocks(M, tm=512):
    """Pick (block_rows, grid_steps) for an M-row matmul.

    Guarantees >= 2 grid steps when possible so v7x's two TensorCores both get
    work on the 'parallel' axis (no effect on single-TC v5e/v6e)."""
    Mp = _round_up(max(M, 1), 8)
    if Mp <= 8:
        return Mp, 1
    g = max(2, _cdiv(Mp, tm))
    bm = _round_up(_cdiv(Mp, g), 8)
    g = _cdiv(Mp, bm)
    return bm, g


# ----------------------------------------------------------------------------
# Kernel 1: fused extractor + RPN  (one launch, two lane-dense outputs)
#   feat = relu(x @ W_ext + b_ext)        -> written out (bf16)
#   h    = relu(feat @ W_rpn + b_rpn)     -> stays in VMEM/vregs
#   rpn  = h @ W_rpnout + b_rpnout        -> written out (f32, [loc|score])
# ----------------------------------------------------------------------------
def _ext_rpn_kernel(x_ref, we_ref, be_ref, wr_ref, br_ref, wo_ref, bo_ref,
                    feat_ref, rpn_ref):
    feat = jnp.dot(x_ref[...], we_ref[...], preferred_element_type=jnp.float32)
    feat = jnp.maximum(feat + be_ref[...], 0.0)
    feat_bf = feat.astype(jnp.bfloat16)
    feat_ref[...] = feat_bf
    h = jnp.dot(feat_bf, wr_ref[...], preferred_element_type=jnp.float32)
    h = jnp.maximum(h + br_ref[...], 0.0)
    out = jnp.dot(h.astype(jnp.bfloat16), wo_ref[...],
                  preferred_element_type=jnp.float32)
    rpn_ref[...] = (out + bo_ref[...]).astype(rpn_ref.dtype)


def extractor_rpn_fused(x, w_ext, b_ext, w_rpn, b_rpn, w_rpnout, b_rpnout,
                        tm=512):
    M, K = x.shape
    P = w_ext.shape[1]
    bm, g = _choose_blocks(M, tm)
    Mp = bm * g
    xp = x if Mp == M else jnp.pad(x, ((0, Mp - M), (0, 0)))
    feat, rpn = pl.pallas_call(
        _ext_rpn_kernel,
        out_shape=(jax.ShapeDtypeStruct((Mp, P), jnp.bfloat16),
                   jax.ShapeDtypeStruct((Mp, P), jnp.float32)),
        grid=(g,),
        in_specs=[pl.BlockSpec((bm, K), lambda i: (i, 0)),
                  pl.BlockSpec((K, P), lambda i: (0, 0)),
                  pl.BlockSpec((1, P), lambda i: (0, 0)),
                  pl.BlockSpec((P, P), lambda i: (0, 0)),
                  pl.BlockSpec((1, P), lambda i: (0, 0)),
                  pl.BlockSpec((P, P), lambda i: (0, 0)),
                  pl.BlockSpec((1, P), lambda i: (0, 0))],
        out_specs=(pl.BlockSpec((bm, P), lambda i: (i, 0)),
                   pl.BlockSpec((bm, P), lambda i: (i, 0))),
        compiler_params=pltpu.CompilerParams(
            dimension_semantics=("parallel",)),
    )(xp.astype(w_ext.dtype), w_ext, b_ext, w_rpn, b_rpn, w_rpnout, b_rpnout)
    return feat[:M], rpn[:M]


# ----------------------------------------------------------------------------
# Kernel 2: fused head (one launch, grid over images).
#   pooled = onehot(roi_center_idx) @ feat   (RoI "pool" gather on the MXU)
#   h      = relu(pooled @ W_fc + b_fc)
#   out    = h @ W_headout + b_headout       ([cls_loc | score], lane-dense)
# ----------------------------------------------------------------------------
def _head_kernel(idx_ref, feat_ref, wfc_ref, bfc_ref, wout_ref, bout_ref,
                 o_ref):
    s_pad = idx_ref.shape[1]
    hw = feat_ref.shape[1]
    idx = idx_ref[0]                                   # (S_pad, 1) int32
    feat = feat_ref[0]                                 # (HWp, 128) bf16
    hw_iota = jax.lax.broadcasted_iota(jnp.int32, (s_pad, hw), 1)
    onehot = (hw_iota == idx).astype(feat.dtype)       # (S_pad, HWp)
    pooled = jnp.dot(onehot, feat, preferred_element_type=jnp.float32)
    h = jnp.dot(pooled.astype(wfc_ref.dtype), wfc_ref[...],
                preferred_element_type=jnp.float32)
    h = jnp.maximum(h + bfc_ref[...], 0.0)
    out = jnp.dot(h.astype(wout_ref.dtype), wout_ref[...],
                  preferred_element_type=jnp.float32) + bout_ref[...]
    o_ref[...] = out[None, :, :].astype(o_ref.dtype)


def head_fused(feat_rows, idx, w_fc, b_fc, w_out, b_out):
    n, hwp, cp = feat_rows.shape
    s_pad = idx.shape[1]
    out = pl.pallas_call(
        _head_kernel,
        out_shape=jax.ShapeDtypeStruct((n, s_pad, cp), jnp.float32),
        grid=(n,),
        in_specs=[pl.BlockSpec((1, s_pad, 1), lambda i: (i, 0, 0)),
                  pl.BlockSpec((1, hwp, cp), lambda i: (i, 0, 0)),
                  pl.BlockSpec((cp, cp), lambda i: (0, 0)),
                  pl.BlockSpec((1, cp), lambda i: (0, 0)),
                  pl.BlockSpec((cp, cp), lambda i: (0, 0)),
                  pl.BlockSpec((1, cp), lambda i: (0, 0))],
        out_specs=pl.BlockSpec((1, s_pad, cp), lambda i: (i, 0, 0)),
        compiler_params=pltpu.CompilerParams(
            dimension_semantics=("parallel",)),
    )(idx, feat_rows, w_fc, b_fc, w_out, b_out)
    return out


# ----------------------------------------------------------------------------
# Kernel 3: all four losses for all images, one launch (grid over images).
# Big axis (anchors / rois) lives on the 128-lane dimension.
# ----------------------------------------------------------------------------
def _losses_kernel(rpn_pl_ref, rpn_gl_ref, rpn_lb_ref, rpn_sc_ref,
                   roi_pl_ref, roi_gl_ref, roi_lb_ref, roi_sc_ref,
                   o_ref, *, rpn_sigma, roi_sigma):

    def smooth_l1(pred, gt, lbl, sigma):
        # pred/gt: (4, L), lbl: (1, L) int32
        sigma2 = sigma * sigma
        mask = (lbl > 0).astype(jnp.float32)
        diff = jnp.abs(gt - pred)
        loss = jnp.where(diff < (1.0 / sigma2),
                         0.5 * sigma2 * diff * diff,
                         diff - 0.5 / sigma2)
        total = jnp.sum(loss * mask, keepdims=True)                 # (1, 1)
        num_pos = jnp.maximum(jnp.sum(mask, keepdims=True), 1.0)
        return total * pl.reciprocal(num_pos, approx=True)

    def cross_entropy(logits, lbl):
        # logits: (C, L), lbl: (1, L) int32; ignore_index = -1
        m = jnp.max(logits, axis=0, keepdims=True)
        lse = m + jnp.log(jnp.sum(jnp.exp(logits - m), axis=0, keepdims=True))
        row = jax.lax.broadcasted_iota(jnp.int32, logits.shape, 0)
        onehot = (row == lbl).astype(jnp.float32)
        picked = jnp.sum(logits * onehot, axis=0, keepdims=True)
        valid = (lbl >= 0).astype(jnp.float32)
        nll = (lse - picked) * valid
        denom = jnp.maximum(jnp.sum(valid, keepdims=True), 1.0)
        return jnp.sum(nll, keepdims=True) * pl.reciprocal(denom, approx=True)

    l0 = smooth_l1(rpn_pl_ref[0], rpn_gl_ref[0], rpn_lb_ref[0], rpn_sigma)
    l1 = cross_entropy(rpn_sc_ref[0], rpn_lb_ref[0])
    l2 = smooth_l1(roi_pl_ref[0], roi_gl_ref[0], roi_lb_ref[0], roi_sigma)
    l3 = cross_entropy(roi_sc_ref[0], roi_lb_ref[0])

    lane = jax.lax.broadcasted_iota(jnp.int32, (8, 128), 1)
    out = (l0 * (lane == 0).astype(jnp.float32)
           + l1 * (lane == 1).astype(jnp.float32)
           + l2 * (lane == 2).astype(jnp.float32)
           + l3 * (lane == 3).astype(jnp.float32))
    o_ref[...] = out[None, :, :]


def fused_losses(rpn_pl, rpn_gl, rpn_lb, rpn_sc, roi_pl, roi_gl, roi_lb,
                 roi_sc, rpn_sigma, roi_sigma):
    """Single launch; returns (n, 4) per-image [rpn_loc, rpn_cls, roi_loc, roi_cls]."""
    n = rpn_pl.shape[0]
    A = rpn_pl.shape[2]
    S = roi_pl.shape[2]
    out = pl.pallas_call(
        functools.partial(_losses_kernel,
                          rpn_sigma=float(rpn_sigma),
                          roi_sigma=float(roi_sigma)),
        out_shape=jax.ShapeDtypeStruct((n, 8, 128), jnp.float32),
        grid=(n,),
        in_specs=[pl.BlockSpec((1, 4, A), lambda i: (i, 0, 0)),
                  pl.BlockSpec((1, 4, A), lambda i: (i, 0, 0)),
                  pl.BlockSpec((1, 1, A), lambda i: (i, 0, 0)),
                  pl.BlockSpec((1, 2, A), lambda i: (i, 0, 0)),
                  pl.BlockSpec((1, 4, S), lambda i: (i, 0, 0)),
                  pl.BlockSpec((1, 4, S), lambda i: (i, 0, 0)),
                  pl.BlockSpec((1, 1, S), lambda i: (i, 0, 0)),
                  pl.BlockSpec((1, 3, S), lambda i: (i, 0, 0))],
        out_specs=pl.BlockSpec((1, 8, 128), lambda i: (i, 0, 0)),
        compiler_params=pltpu.CompilerParams(
            dimension_semantics=("parallel",)),
    )(rpn_pl.astype(jnp.float32), rpn_gl.astype(jnp.float32),
      rpn_lb.astype(jnp.int32), rpn_sc.astype(jnp.float32),
      roi_pl.astype(jnp.float32), roi_gl.astype(jnp.float32),
      roi_lb.astype(jnp.int32), roi_sc.astype(jnp.float32))
    return out[:, 0, :4]


# ----------------------------------------------------------------------------
# On-device proposal decode + top-K (replaces per-image numpy loop).
# TODO(synk): reference proposal layer also applies NMS; omitted here.
# ----------------------------------------------------------------------------
@functools.partial(jax.jit, static_argnames=("n_rois", "img_h", "img_w"))
def _decode_and_topk(rpn_locs, fg_scores, anchor, *, n_rois, img_h, img_w):
    w = anchor[:, 2] - anchor[:, 0]
    h = anchor[:, 3] - anchor[:, 1]
    cx = anchor[:, 0] + 0.5 * w
    cy = anchor[:, 1] + 0.5 * h
    dx, dy = rpn_locs[..., 0], rpn_locs[..., 1]
    dw, dh = rpn_locs[..., 2], rpn_locs[..., 3]
    ncx = dx * w + cx
    ncy = dy * h + cy
    nw = jnp.exp(dw) * w
    nh = jnp.exp(dh) * h
    x1 = jnp.clip(ncx - 0.5 * nw, 0.0, img_w)
    y1 = jnp.clip(ncy - 0.5 * nh, 0.0, img_h)
    x2 = jnp.clip(ncx + 0.5 * nw, 0.0, img_w)
    y2 = jnp.clip(ncy + 0.5 * nh, 0.0, img_h)
    boxes = jnp.stack([x1, y1, x2, y2], axis=-1)          # (N, A, 4)
    _, idx = jax.lax.top_k(fg_scores, n_rois)             # (N, n_rois)
    rois = jnp.take_along_axis(boxes, idx[..., None], axis=1)
    return rois                                            # (N, n_rois, 4)


# ----------------------------------------------------------------------------
# numpy glue: bbox utilities + target creators (faithful to reference)
# ----------------------------------------------------------------------------
def bbox2loc(src_bbox, dst_bbox):
    width = src_bbox[:, 2] - src_bbox[:, 0]
    height = src_bbox[:, 3] - src_bbox[:, 1]
    ctr_x = src_bbox[:, 0] + 0.5 * width
    ctr_y = src_bbox[:, 1] + 0.5 * height
    base_width = dst_bbox[:, 2] - dst_bbox[:, 0]
    base_height = dst_bbox[:, 3] - dst_bbox[:, 1]
    base_ctr_x = dst_bbox[:, 0] + 0.5 * base_width
    base_ctr_y = dst_bbox[:, 1] + 0.5 * base_height
    eps = np.finfo(height.dtype).eps
    width = np.maximum(width, eps)
    height = np.maximum(height, eps)
    dx = (base_ctr_x - ctr_x) / width
    dy = (base_ctr_y - ctr_y) / height
    dw = np.log(base_width / width)
    dh = np.log(base_height / height)
    return np.vstack((dx, dy, dw, dh)).transpose()


def bbox_iou(bbox_a, bbox_b):
    tl = np.maximum(bbox_a[:, None, :2], bbox_b[:, :2])
    br = np.minimum(bbox_a[:, None, 2:], bbox_b[:, 2:])
    area_i = np.prod(br - tl, axis=2) * (tl < br).all(axis=2)
    area_a = np.prod(bbox_a[:, 2:] - bbox_a[:, :2], axis=1)
    area_b = np.prod(bbox_b[:, 2:] - bbox_b[:, :2], axis=1)
    return area_i / (area_a[:, None] + area_b - area_i)


class AnchorTargetCreator(object):
    def __init__(self, n_sample=256, pos_iou_thresh=0.7, neg_iou_thresh=0.3,
                 pos_ratio=0.5):
        self.n_sample = n_sample
        self.pos_iou_thresh = pos_iou_thresh
        self.neg_iou_thresh = neg_iou_thresh
        self.pos_ratio = pos_ratio

    def __call__(self, bbox, anchor):
        argmax_ious, label = self._create_label(anchor, bbox)
        if (label > 0).any():
            loc = bbox2loc(anchor, bbox[argmax_ious])
            return loc, label
        return np.zeros_like(anchor), label

    def _calc_ious(self, anchor, bbox):
        ious = bbox_iou(anchor, bbox)
        if len(bbox) == 0:
            return (np.zeros(len(anchor), np.int32), np.zeros(len(anchor)),
                    np.zeros(len(bbox)))
        argmax_ious = ious.argmax(axis=1)
        max_ious = np.max(ious, axis=1)
        gt_argmax_ious = ious.argmax(axis=0)
        for i in range(len(gt_argmax_ious)):
            argmax_ious[gt_argmax_ious[i]] = i
        return argmax_ious, max_ious, gt_argmax_ious

    def _create_label(self, anchor, bbox):
        label = np.empty((len(anchor),), dtype=np.int32)
        label.fill(-1)
        argmax_ious, max_ious, gt_argmax_ious = self._calc_ious(anchor, bbox)
        label[max_ious < self.neg_iou_thresh] = 0
        label[max_ious > self.pos_iou_thresh] = 1
        if len(gt_argmax_ious) > 0:
            label[gt_argmax_ious] = 1
        n_pos = int(self.pos_ratio * self.n_sample)
        pos_index = np.where(label == 1)[0]
        if len(pos_index) > n_pos:
            disable_index = np.random.choice(pos_index, size=len(pos_index) - n_pos,
                                             replace=False)
            label[disable_index] = -1
        n_neg = self.n_sample - np.sum(label == 1)
        neg_index = np.where(label == 0)[0]
        if len(neg_index) > n_neg:
            disable_index = np.random.choice(neg_index, size=len(neg_index) - n_neg,
                                             replace=False)
            label[disable_index] = -1
        return argmax_ious, label


class ProposalTargetCreator(object):
    def __init__(self, n_sample=128, pos_ratio=0.5, pos_iou_thresh=0.5,
                 neg_iou_thresh_high=0.5, neg_iou_thresh_low=0):
        self.n_sample = n_sample
        self.pos_ratio = pos_ratio
        self.pos_roi_per_image = np.round(self.n_sample * self.pos_ratio)
        self.pos_iou_thresh = pos_iou_thresh
        self.neg_iou_thresh_high = neg_iou_thresh_high
        self.neg_iou_thresh_low = neg_iou_thresh_low

    def __call__(self, roi, bbox, label, loc_normalize_std=(0.1, 0.1, 0.2, 0.2)):
        roi = np.concatenate((np.asarray(roi), bbox), axis=0)
        iou = bbox_iou(roi, bbox)
        if len(bbox) == 0:
            gt_assignment = np.zeros(len(roi), np.int32)
            max_iou = np.zeros(len(roi))
            gt_roi_label = np.zeros(len(roi))
        else:
            gt_assignment = iou.argmax(axis=1)
            max_iou = iou.max(axis=1)
            gt_roi_label = label[gt_assignment] + 1
        pos_index = np.where(max_iou >= self.pos_iou_thresh)[0]
        pos_roi_per_this_image = int(min(self.pos_roi_per_image, pos_index.size))
        if pos_index.size > 0:
            pos_index = np.random.choice(pos_index, size=pos_roi_per_this_image,
                                         replace=False)
        neg_index = np.where((max_iou < self.neg_iou_thresh_high) &
                             (max_iou >= self.neg_iou_thresh_low))[0]
        neg_roi_per_this_image = self.n_sample - pos_roi_per_this_image
        neg_roi_per_this_image = int(min(neg_roi_per_this_image, neg_index.size))
        if neg_index.size > 0:
            neg_index = np.random.choice(neg_index, size=neg_roi_per_this_image,
                                         replace=False)
        keep_index = np.append(pos_index, neg_index)
        sample_roi = roi[keep_index]
        if len(bbox) == 0:
            return sample_roi, np.zeros_like(sample_roi), gt_roi_label[keep_index]
        gt_roi_loc = bbox2loc(sample_roi, bbox[gt_assignment[keep_index]])
        gt_roi_loc = gt_roi_loc / np.array(loc_normalize_std, np.float32)
        gt_roi_label = gt_roi_label[keep_index]
        gt_roi_label[pos_roi_per_this_image:] = 0
        return sample_roi, gt_roi_loc, gt_roi_label


def generate_anchor_base(base_size=16, ratios=(0.5, 1, 2), anchor_scales=(1, 2, 4)):
    ab = np.zeros((len(ratios) * len(anchor_scales), 4), dtype=np.float32)
    for i, r in enumerate(ratios):
        for j, s in enumerate(anchor_scales):
            h = base_size * s * np.sqrt(r)
            w = base_size * s * np.sqrt(1.0 / r)
            idx = i * len(anchor_scales) + j
            ab[idx] = [-w / 2.0, -h / 2.0, w / 2.0, h / 2.0]
    return ab


def enumerate_shifted_anchor(anchor_base, feat_stride, H, W):
    shift_x = np.arange(0, W * feat_stride, feat_stride)
    shift_y = np.arange(0, H * feat_stride, feat_stride)
    sx, sy = np.meshgrid(shift_x, shift_y)
    shift = np.stack((sx.ravel(), sy.ravel(), sx.ravel(), sy.ravel()), axis=1)
    A, K = anchor_base.shape[0], shift.shape[0]
    anchor = anchor_base.reshape(1, A, 4) + shift.reshape(K, 1, 4)
    return anchor.reshape(K * A, 4).astype(np.float32)


# ----------------------------------------------------------------------------
# Synthetic FasterRCNN (extractor / rpn / head) with fused Pallas compute
# ----------------------------------------------------------------------------
class FasterRCNN:
    FEAT_STRIDE = 16
    N_ANCHOR = 9
    C_FEAT = 16            # real feature channels (cols 0..15 of the padded 128)
    HID = 32               # real head hidden units
    N_CLASS = 3            # 2 foreground classes + background
    N_ROIS = 32            # proposals kept per image
    C_PAD = 128            # lane-dense padded channel width

    def __init__(self, key):
        ks = jax.random.split(key, 7)
        patch_dim = 3 * self.FEAT_STRIDE * self.FEAT_STRIDE
        std = 0.05
        P = self.C_PAD

        def pad2(w, rows, cols):
            out = jnp.zeros((rows, cols), jnp.float32)
            return out.at[:w.shape[0], :w.shape[1]].set(w)

        # extractor patch-embedding (768 -> 16), padded to 128 output lanes
        w_ext = jax.random.normal(ks[0], (patch_dim, self.C_FEAT), jnp.float32) * std
        self.W_ext = pad2(w_ext, patch_dim, P).astype(jnp.bfloat16)
        self.b_ext = jnp.zeros((1, P), jnp.float32)

        # RPN: hid = relu(feat @ W_rpn + b); out = hid @ [W_loc | W_sco]
        w_rpn = jax.random.normal(ks[1], (self.C_FEAT, self.C_FEAT), jnp.float32) * std
        self.W_rpn = pad2(w_rpn, P, P).astype(jnp.bfloat16)
        self.b_rpn = jnp.zeros((1, P), jnp.float32)
        w_loc = jax.random.normal(ks[2], (self.C_FEAT, self.N_ANCHOR * 4), jnp.float32) * std
        w_sco = jax.random.normal(ks[3], (self.C_FEAT, self.N_ANCHOR * 2), jnp.float32) * std
        self.W_rpnout = pad2(jnp.concatenate([w_loc, w_sco], axis=1), P, P).astype(jnp.bfloat16)
        self.b_rpnout = jnp.zeros((1, P), jnp.float32)

        # head: h = relu(pooled @ W_fc + b); out = h @ [W_cl | W_cs]
        w_fc = jax.random.normal(ks[4], (self.C_FEAT, self.HID), jnp.float32) * std
        self.W_fc = pad2(w_fc, P, P).astype(jnp.bfloat16)
        self.b_fc = jnp.zeros((1, P), jnp.float32)
        w_cl = jax.random.normal(ks[5], (self.HID, self.N_CLASS * 4), jnp.float32) * std
        w_cs = jax.random.normal(ks[6], (self.HID, self.N_CLASS), jnp.float32) * std
        self.W_headout = pad2(jnp.concatenate([w_cl, w_cs], axis=1), P, P).astype(jnp.bfloat16)
        self.b_headout = jnp.zeros((1, P), jnp.float32)

    def extract_and_rpn(self, imgs, img_size, scale):
        """Fused extractor + RPN: one Pallas launch produces both the base
        feature and the RPN [loc|score] output; proposals decoded on-device."""
        N, C, H, W = imgs.shape
        s = self.FEAT_STRIDE
        Hf, Wf = H // s, W // s
        A = self.N_ANCHOR
        # TODO(synk): this patch rearrangement (XLA transpose) could be folded
        # into the kernel's BlockSpec/DMA to avoid one HBM copy of the image.
        x = jnp.transpose(imgs.astype(jnp.bfloat16), (0, 2, 3, 1))        # NHWC
        x = x.reshape(N, Hf, s, Wf, s, C).transpose(0, 1, 3, 2, 4, 5)
        x = x.reshape(N * Hf * Wf, s * s * C)                             # (M, 768)

        feat, rpn_out = extractor_rpn_fused(
            x, self.W_ext, self.b_ext, self.W_rpn, self.b_rpn,
            self.W_rpnout, self.b_rpnout)                                 # (M,128) x2

        rpn_locs = rpn_out[:, :A * 4].reshape(N, Hf * Wf * A, 4)
        rpn_scores = rpn_out[:, A * 4:A * 6].reshape(N, Hf * Wf * A, 2)

        anchor = enumerate_shifted_anchor(generate_anchor_base(), s, Hf, Wf)
        rois = _decode_and_topk(rpn_locs, rpn_scores[..., 1], jnp.asarray(anchor),
                                n_rois=self.N_ROIS,
                                img_h=float(img_size[0]), img_w=float(img_size[1]))
        rois = rois.reshape(N * self.N_ROIS, 4)
        roi_indices = np.repeat(np.arange(N, dtype=np.int32), self.N_ROIS)

        base_feature = feat.reshape(N, Hf * Wf, self.C_PAD)               # bf16 rows
        return base_feature, rpn_locs, rpn_scores, rois, roi_indices, anchor, (Hf, Wf)

    def head(self, base_feature, sample_rois, feat_hw):
        """Batched head: center-cell RoI 'pool' gather fused into the head MLP
        kernel (ONE launch for the whole batch, grid over images).
        TODO(synk): real head uses 7x7 RoIPool + VGG classifier; simplified."""
        Hf, Wf = feat_hw
        n, HW, Cp = base_feature.shape
        HWp = _round_up(HW, 8)
        feat = base_feature if HWp == HW else jnp.pad(
            base_feature, ((0, 0), (0, HWp - HW), (0, 0)))

        roi = np.asarray(sample_rois, np.float32)                          # (n,S,4)
        cx = (roi[..., 0] + roi[..., 2]) * 0.5
        cy = (roi[..., 1] + roi[..., 3]) * 0.5
        col = np.clip((cx / self.FEAT_STRIDE).astype(np.int32), 0, Wf - 1)
        row = np.clip((cy / self.FEAT_STRIDE).astype(np.int32), 0, Hf - 1)
        idx = (row * Wf + col).astype(np.int32)[..., None]                 # (n,S,1)

        out = head_fused(feat, jnp.asarray(idx), self.W_fc, self.b_fc,
                         self.W_headout, self.b_headout)                   # (n,S,128)
        roi_cls_loc = out[..., :self.N_CLASS * 4]                          # (n,S,12)
        roi_score = out[..., self.N_CLASS * 4:self.N_CLASS * 4 + self.N_CLASS]
        return roi_cls_loc, roi_score


# ----------------------------------------------------------------------------
# FasterRCNNTrainer
# ----------------------------------------------------------------------------
class FasterRCNNTrainer:
    def __init__(self, faster_rcnn, optimizer=None):
        self.faster_rcnn = faster_rcnn
        self.optimizer = optimizer
        self.rpn_sigma = 1
        self.roi_sigma = 1
        self.anchor_target_creator = AnchorTargetCreator()
        self.proposal_target_creator = ProposalTargetCreator()
        self.loc_normalize_std = [0.1, 0.1, 0.2, 0.2]

    def forward(self, imgs, bboxes, labels, scale):
        n = imgs.shape[0]
        img_size = imgs.shape[2:]
        frc = self.faster_rcnn

        # fused extractor + RPN (one Pallas launch)
        (base_feature, rpn_locs, rpn_scores, rois, roi_indices, anchor,
         feat_hw) = frc.extract_and_rpn(imgs, img_size, scale)

        # single host transfer of the (tiny) rois for target creation
        rois_np = np.asarray(rois)

        # --- host-side target assignment (numpy, as in reference) ---
        gt_rpn_locs, gt_rpn_labels = [], []
        sample_rois, gt_roi_locs, gt_roi_labels, s_counts = [], [], [], []
        for i in range(n):
            bbox = bboxes[i]
            label = labels[i]
            roi = rois_np[roi_indices == i]
            gt_rpn_loc, gt_rpn_label = self.anchor_target_creator(bbox, anchor)
            sample_roi, gt_roi_loc, gt_roi_label = self.proposal_target_creator(
                roi, bbox, label, self.loc_normalize_std)
            gt_rpn_locs.append(np.asarray(gt_rpn_loc, np.float32))
            gt_rpn_labels.append(np.asarray(gt_rpn_label, np.int32))
            sample_rois.append(np.asarray(sample_roi, np.float32).reshape(-1, 4))
            gt_roi_locs.append(np.asarray(gt_roi_loc, np.float32).reshape(-1, 4))
            gt_roi_labels.append(np.asarray(gt_roi_label, np.int32).reshape(-1))
            s_counts.append(sample_rois[-1].shape[0])

        # pad per-image ROI targets to a common S_pad (multiple of 8); padded
        # rows get label -1 and are masked out inside the loss kernel, so the
        # per-image loss values match the un-batched reference exactly.
        s_pad = _round_up(max(max(s_counts), 1), 8)

        def pad_rows(a, fill):
            out = np.full((s_pad,) + a.shape[1:], fill, a.dtype)
            out[:a.shape[0]] = a
            return out

        sr = np.stack([pad_rows(r, 0.0) for r in sample_rois])          # (n,S,4)
        grl = np.stack([pad_rows(l, 0.0) for l in gt_roi_locs])         # (n,S,4)
        grlab = np.stack([pad_rows(l, -1) for l in gt_roi_labels])      # (n,S)

        # --- batched head: ONE fused Pallas launch over all images ---
        roi_cls_loc, roi_score = frc.head(base_feature, sr, feat_hw)

        grlab_j = jnp.asarray(grlab)                                    # (n,S) i32
        sel = jnp.clip(grlab_j, 0, frc.N_CLASS - 1)
        roi_cls_loc_r = roi_cls_loc.reshape(n, s_pad, frc.N_CLASS, 4)
        roi_loc = jnp.take_along_axis(
            roi_cls_loc_r, sel[:, :, None, None], axis=2)[:, :, 0, :]   # (n,S,4)

        # --- batched fused losses: ONE Pallas launch (grid over images) ---
        per_image = fused_losses(
            jnp.transpose(rpn_locs, (0, 2, 1)),                              # (n,4,A)
            jnp.asarray(np.stack(gt_rpn_locs).transpose(0, 2, 1)),           # (n,4,A)
            jnp.asarray(np.stack(gt_rpn_labels)[:, None, :]),                # (n,1,A)
            jnp.transpose(rpn_scores, (0, 2, 1)),                            # (n,2,A)
            jnp.transpose(roi_loc, (0, 2, 1)),                               # (n,4,S)
            jnp.asarray(grl.transpose(0, 2, 1)),                             # (n,4,S)
            grlab_j[:, None, :],                                             # (n,1,S)
            jnp.transpose(roi_score, (0, 2, 1)),                             # (n,3,S)
            self.rpn_sigma, self.roi_sigma)                                  # (n,4)

        loss_sum = jnp.sum(per_image, axis=0)
        losses = [loss_sum[0] / n, loss_sum[1] / n, loss_sum[2] / n, loss_sum[3] / n]
        losses = losses + [sum(losses)]
        return losses

    __call__ = forward


# ----------------------------------------------------------------------------
# main
# ----------------------------------------------------------------------------
if __name__ == "__main__":
    np.random.seed(0)
    key = jax.random.PRNGKey(0)
    k_img, k_net = jax.random.split(key)

    # Small, FasterRCNN-consistent shapes: batch=2, RGB 64x64 images (stride-16).
    imgs = jax.random.normal(k_img, (2, 3, 64, 64), jnp.float32)
    bboxes = [
        np.array([[8.0, 8.0, 40.0, 40.0], [20.0, 24.0, 56.0, 60.0]], dtype=np.float32),
        np.array([[4.0, 10.0, 34.0, 50.0]], dtype=np.float32),
    ]
    labels = [
        np.array([0, 1], dtype=np.int32),
        np.array([1], dtype=np.int32),
    ]
    scale = 1.0

    model = FasterRCNN(k_net)
    trainer = FasterRCNNTrainer(model, optimizer=None)

    losses = trainer(imgs, bboxes, labels, scale)
    total = jax.block_until_ready(losses[-1])
    for li in losses[:-1]:
        jax.block_until_ready(li)
    assert np.isfinite(float(total))
    print("KERNEL_OK")
</pallas_src>

<mosaic_0001>
module attributes {stable_mosaic.version = 11 : i64} {
  func.func @_ext_rpn_kernel(%arg0: i32, %arg1: memref<16x768xbf16, #tpu.memory_space<vmem>>, %arg2: memref<768x128xbf16, #tpu.memory_space<vmem>>, %arg3: memref<1x128xf32, #tpu.memory_space<vmem>>, %arg4: memref<128x128xbf16, #tpu.memory_space<vmem>>, %arg5: memref<1x128xf32, #tpu.memory_space<vmem>>, %arg6: memref<128x128xbf16, #tpu.memory_space<vmem>>, %arg7: memref<1x128xf32, #tpu.memory_space<vmem>>, %arg8: memref<16x128xbf16, #tpu.memory_space<vmem>>, %arg9: memref<16x128xf32, #tpu.memory_space<vmem>>) attributes {dimension_semantics = [#tpu.dimension_semantics<parallel>], iteration_bounds = array<i64: 2>, scalar_prefetch = 0 : i64, scratch_operands = 0 : i64, tpu.core_type = #tpu.core_type<tc>, window_params = [{transform_indices = @transform_0, window_bounds = array<i64: 16, 768>}, {pipeline_mode = #tpu.pipeline_mode<synchronous>, transform_indices = @transform_1, window_bounds = array<i64: 768, 128>}, {pipeline_mode = #tpu.pipeline_mode<synchronous>, transform_indices = @transform_2, window_bounds = array<i64: 1, 128>}, {pipeline_mode = #tpu.pipeline_mode<synchronous>, transform_indices = @transform_3, window_bounds = array<i64: 128, 128>}, {pipeline_mode = #tpu.pipeline_mode<synchronous>, transform_indices = @transform_4, window_bounds = array<i64: 1, 128>}, {pipeline_mode = #tpu.pipeline_mode<synchronous>, transform_indices = @transform_5, window_bounds = array<i64: 128, 128>}, {pipeline_mode = #tpu.pipeline_mode<synchronous>, transform_indices = @transform_6, window_bounds = array<i64: 1, 128>}, {transform_indices = @transform_7, window_bounds = array<i64: 16, 128>}, {transform_indices = @transform_8, window_bounds = array<i64: 16, 128>}]} {
    %c0 = arith.constant 0 : index
    %c0_0 = arith.constant 0 : index
    %0 = vector.load %arg1[%c0, %c0_0] : memref<16x768xbf16, #tpu.memory_space<vmem>>, vector<16x768xbf16>
    %c0_1 = arith.constant 0 : index
    %c0_2 = arith.constant 0 : index
    %1 = vector.load %arg2[%c0_1, %c0_2] : memref<768x128xbf16, #tpu.memory_space<vmem>>, vector<768x128xbf16>
    %cst = arith.constant dense<0.000000e+00> : vector<16x128xf32>
    %2 = tpu.matmul %0, %1, %cst {dimension_numbers = #tpu.dot_dimension_numbers<[1], [0], [0], [1], [0, 0, 1, 1], [], []>} : vector<16x768xbf16>, vector<768x128xbf16>, vector<16x128xf32> -> vector<16x128xf32>
    %c0_3 = arith.constant 0 : index
    %c0_4 = arith.constant 0 : index
    %3 = vector.load %arg3[%c0_3, %c0_4] : memref<1x128xf32, #tpu.memory_space<vmem>>, vector<1x128xf32>
    %4 = vector.broadcast %3 : vector<1x128xf32> to vector<16x128xf32>
    %5 = arith.addf %2, %4 : vector<16x128xf32>
    %cst_5 = arith.constant 0.000000e+00 : f32
    %6 = vector.broadcast %cst_5 : f32 to vector<16x128xf32>
    %7 = arith.maximumf %5, %6 : vector<16x128xf32>
    %8 = arith.truncf %7 : vector<16x128xf32> to vector<16x128xbf16>
    %c0_6 = arith.constant 0 : index
    %c0_7 = arith.constant 0 : index
    %9 = vector.load %arg8[%c0_6, %c0_7] : memref<16x128xbf16, #tpu.memory_space<vmem>>, vector<16x128xbf16>
    tpu.vector_store %arg8[%c0_6, %c0_7], %8 {strides = array<i32>} : memref<16x128xbf16, #tpu.memory_space<vmem>>, vector<16x128xbf16>,
    %c0_8 = arith.constant 0 : index
    %c0_9 = arith.constant 0 : index
    %10 = vector.load %arg4[%c0_8, %c0_9] : memref<128x128xbf16, #tpu.memory_space<vmem>>, vector<128x128xbf16>
    %cst_10 = arith.constant dense<0.000000e+00> : vector<16x128xf32>
    %11 = tpu.matmul %8, %10, %cst_10 {dimension_numbers = #tpu.dot_dimension_numbers<[1], [0], [0], [1], [0, 0, 1, 1], [], []>} : vector<16x128xbf16>, vector<128x128xbf16>, vector<16x128xf32> -> vector<16x128xf32>
    %c0_11 = arith.constant 0 : index
    %c0_12 = arith.constant 0 : index
    %12 = vector.load %arg5[%c0_11, %c0_12] : memref<1x128xf32, #tpu.memory_space<vmem>>, vector<1x128xf32>
    %13 = vector.broadcast %12 : vector<1x128xf32> to vector<16x128xf32>
    %14 = arith.addf %11, %13 : vector<16x128xf32>
    %cst_13 = arith.constant 0.000000e+00 : f32
    %15 = vector.broadcast %cst_13 : f32 to vector<16x128xf32>
    %16 = arith.maximumf %14, %15 : vector<16x128xf32>
    %17 = arith.truncf %16 : vector<16x128xf32> to vector<16x128xbf16>
    %c0_14 = arith.constant 0 : index
    %c0_15 = arith.constant 0 : index
    %18 = vector.load %arg6[%c0_14, %c0_15] : memref<128x128xbf16, #tpu.memory_space<vmem>>, vector<128x128xbf16>
    %cst_16 = arith.constant dense<0.000000e+00> : vector<16x128xf32>
    %19 = tpu.matmul %17, %18, %cst_16 {dimension_numbers = #tpu.dot_dimension_numbers<[1], [0], [0], [1], [0, 0, 1, 1], [], []>} : vector<16x128xbf16>, vector<128x128xbf16>, vector<16x128xf32> -> vector<16x128xf32>
    %c0_17 = arith.constant 0 : index
    %c0_18 = arith.constant 0 : index
    %20 = vector.load %arg7[%c0_17, %c0_18] : memref<1x128xf32, #tpu.memory_space<vmem>>, vector<1x128xf32>
    %21 = vector.broadcast %20 : vector<1x128xf32> to vector<16x128xf32>
    %22 = arith.addf %19, %21 : vector<16x128xf32>
    %c0_19 = arith.constant 0 : index
    %c0_20 = arith.constant 0 : index
    %23 = vector.load %arg9[%c0_19, %c0_20] : memref<16x128xf32, #tpu.memory_space<vmem>>, vector<16x128xf32>
    tpu.vector_store %arg9[%c0_19, %c0_20], %22 {strides = array<i32>} : memref<16x128xf32, #tpu.memory_space<vmem>>, vector<16x128xf32>,
    return
  }
  func.func @transform_0(%arg0: i32) -> (i32, i32) {
    %c0_i32 = arith.constant 0 : i32
    %c0_i32_0 = arith.constant 0 : i32
    return %arg0, %c0_i32 : i32, i32
  }
  func.func @transform_1(%arg0: i32) -> (i32, i32) {
    %c0_i32 = arith.constant 0 : i32
    %c0_i32_0 = arith.constant 0 : i32
    %c0_i32_1 = arith.constant 0 : i32
    return %c0_i32, %c0_i32_0 : i32, i32
  }
  func.func @transform_2(%arg0: i32) -> (i32, i32) {
    %c0_i32 = arith.constant 0 : i32
    %c0_i32_0 = arith.constant 0 : i32
    %c0_i32_1 = arith.constant 0 : i32
    return %c0_i32, %c0_i32_0 : i32, i32
  }
  func.func @transform_3(%arg0: i32) -> (i32, i32) {
    %c0_i32 = arith.constant 0 : i32
    %c0_i32_0 = arith.constant 0 : i32
    %c0_i32_1 = arith.constant 0 : i32
    return %c0_i32, %c0_i32_0 : i32, i32
  }
  func.func @transform_4(%arg0: i32) -> (i32, i32) {
    %c0_i32 = arith.constant 0 : i32
    %c0_i32_0 = arith.constant 0 : i32
    %c0_i32_1 = arith.constant 0 : i32
    return %c0_i32, %c0_i32_0 : i32, i32
  }
  func.func @transform_5(%arg0: i32) -> (i32, i32) {
    %c0_i32 = arith.constant 0 : i32
    %c0_i32_0 = arith.constant 0 : i32
    %c0_i32_1 = arith.constant 0 : i32
    return %c0_i32, %c0_i32_0 : i32, i32
  }
  func.func @transform_6(%arg0: i32) -> (i32, i32) {
    %c0_i32 = arith.constant 0 : i32
    %c0_i32_0 = arith.constant 0 : i32
    %c0_i32_1 = arith.constant 0 : i32
    return %c0_i32, %c0_i32_0 : i32, i32
  }
  func.func @transform_7(%arg0: i32) -> (i32, i32) {
    %c0_i32 = arith.constant 0 : i32
    %c0_i32_0 = arith.constant 0 : i32
    return %arg0, %c0_i32 : i32, i32
  }
  func.func @transform_8(%arg0: i32) -> (i32, i32) {
    %c0_i32 = arith.constant 0 : i32
    %c0_i32_0 = arith.constant 0 : i32
    return %arg0, %c0_i32 : i32, i32
  }
}

</mosaic_0001>

<llo_original>
// kernel: tpu_custom_call.1
$region0: #{tpu_custom_call.1}
  #allocation0 [shape = 'u32[]', space=smem, size = 0x4, offset = 0x4, fixed_abs, tag = 'smem constant byte address 0x4 - core index']
  #allocation1 [shape = 'u32[144,128]{1,0:T(1,128)}', space=vmem, size = 0x12000, scoped, tag = 'internal scratch']
  %s0 = inlined_call_operand.hbm [shape: bf16[32,768], index: 0, kind: input, shape index: {}]
  %s1 = inlined_call_operand.hbm [shape: bf16[768,128], index: 1, kind: input, shape index: {}]
  %s2 = inlined_call_operand.vmem [shape: f32[1,128], index: 2, kind: input, shape index: {}]
  %s3 = inlined_call_operand.hbm [shape: bf16[128,128], index: 3, kind: input, shape index: {}]
  %s4 = inlined_call_operand.vmem [shape: f32[1,128], index: 4, kind: input, shape index: {}]
  %s5 = inlined_call_operand.hbm [shape: bf16[128,128], index: 5, kind: input, shape index: {}]
  %s6 = inlined_call_operand.vmem [shape: f32[1,128], index: 6, kind: input, shape index: {}]
  %s7 = inlined_call_operand.hbm [shape: bf16[32,128], index: 7, kind: output, shape index: {0}]
  %s8 = inlined_call_operand.hbm [shape: f32[32,128], index: 8, kind: output, shape index: {1}]
  %9 = xla_tuple %s7, %s8
  %s10 = sld [smem:[#allocation0]]
  $region85: #{tpu_custom_call.1} parent=0
    _
  %s12 = ssub.s32 1, %s10
  %s13 = scalar_select 0, %s12, %s10
  $region1: #{tpu_custom_call.1} parent=0
    #allocation2 [shape = 'u8[49152]{0}', space=vmem, size = 0xc000, scoped, tag = 'input window, operand 0']
    #allocation3 [shape = 's32[2]{0}', space=sflag, size = 0x8, scoped, tag = 'scoped memory for tpu_custom_call.1']
    #allocation4 [shape = 's32[2]{0}', space=sflag, size = 0x8, scoped, tag = 'scoped memory for tpu_custom_call.1']
    #allocation5 [shape = 'u8[196608]{0}', space=vmem, size = 0x30000, scoped, tag = 'input window, operand 1, single buffered']
    #allocation6 [shape = 's32[1]{0}', space=sflag, size = 0x4, scoped, tag = 'scoped memory for tpu_custom_call.1']
    #allocation7 [shape = 'u8[32768]{0}', space=vmem, size = 0x8000, scoped, tag = 'input window, operand 3, single buffered']
    #allocation8 [shape = 'u8[32768]{0}', space=vmem, size = 0x8000, scoped, tag = 'input window, operand 5, single buffered']
    #allocation9 [shape = 's32[1]{0}', space=sflag, size = 0x4, scoped, tag = 'scoped memory for tpu_custom_call.1']
    #allocation10 [shape = 'u8[8192]{0}', space=vmem, size = 0x2000, scoped, tag = 'output window, operand 0']
    #allocation11 [shape = 'u8[16384]{0}', space=vmem, size = 0x4000, scoped, tag = 'output window, operand 1']
    #allocation12 [shape = 's32[2]{0}', space=sflag, size = 0x8, scoped, tag = 'scoped memory for tpu_custom_call.1']
    %14 = vsyncpa [#allocation3], 0
    %s15 = scalar_lea.sflag [#allocation3], 1
    %16 = vsyncpa %s15, 0
    %17 = vsyncpa [#allocation6], 0
    %18 = vsyncpa [#allocation9], 0
    %19 = vsyncpa [#allocation4], 0
    %s20 = scalar_lea.sflag [#allocation4], 1
    %21 = vsyncpa %s20, 0
    %22 = vsyncpa [#allocation12], 0
    %s23 = scalar_lea.sflag [#allocation12], 1
    %24 = vsyncpa %s23, 0
    loop: start=0, step=1, limit=4
    $region2: #{tpu_custom_call.1} parent=1 // loop_pre_header
      _
    $region3: #{tpu_custom_call.1} parent=1 // loop_header
      %s26 = sphi 0, %s30
      %p27 = scmp.ge.s32.totalorder %s26, 4
      %s36 = sphi 0, %s38
      %s39 = sphi 0, %s36
      %s40 = sphi 0, %s39
      %s56 = sphi 0, %s40
      %s60 = sphi 0, %s60
      %s62 = sphi 0, %s60
      %s63 = sphi 0, %s62
      %s77 = sphi 0, %s63
      %s81 = sphi 0, %s81
      %s83 = sphi 0, %s81
      %s84 = sphi 0, %s83
      %s98 = sphi 0, %s84
      %s102 = sphi 0, %s102
      %s104 = sphi 0, %s102
      %s105 = sphi 0, %s104
      %s119 = sphi 0, %s105
      %s123 = sphi 0, %s123
      %s125 = sphi 0, %s123
      %s126 = sphi 0, %s125
      %s140 = sphi 0, %s126
      %s144 = sphi 0, %s144
      %s146 = sphi 0, %s144
      %s147 = sphi 0, %s146
      %s161 = sphi 0, %s147
      %s165 = sphi 0, %s165
      %s167 = sphi 0, %s165
      %s168 = sphi 0, %s167
      %s182 = sphi 0, %s168
      %s188 = sphi 0, %s190
      %s191 = sphi 0, %s188
      %s192 = sphi 0, %s191
      %s208 = sphi 0, %s192
      %s214 = sphi 0, %s216
      %s217 = sphi 0, %s214
      %s218 = sphi 0, %s217
      %s234 = sphi 0, %s218
    $region4: #{tpu_custom_call.1} parent=1 // loop_header_branch
      %29 = sbr.rel (%p27) target = $region8
    $region5: #{tpu_custom_call.1} parent=1 // loop_body
      %s31 = ssub.s32 %s26, 1
      %s32 = ssub.s32 %s26, 2
      %s33 = sadd.s32 %s26, 1
      %s34 = ssub.s32 %s26, %s33
      %p35 = scmp.eq.s32.totalorder %s34, 0
      %s37 = sadd.s32 %s36, 1
      %s38 = scalar_select %p35, %s36, %s37
      %p41 = pneg %p35
      %p42 = scmp.eq.s32.totalorder %s26, 1
      %p43 = por %p41, %p42
      %p44 = scmp.ne.s32.totalorder %s36, %s39
      %p45 = scmp.eq.s32.totalorder %s26, 0
      %p46 = por %p44, %p45
      %p47 = scmp.ne.s32.totalorder %s36, %s39
      %p48 = scmp.eq.s32.totalorder %s31, 1
      %p49 = por %p47, %p48
      %p50 = scmp.ne.s32.totalorder %s39, %s40
      %p51 = scmp.eq.s32.totalorder %s31, 0
      %p52 = por %p50, %p51
      %p53 = scmp.ne.s32.totalorder %s39, %s40
      %p54 = scmp.eq.s32.totalorder %s32, 1
      %p55 = por %p53, %p54
      %p57 = scmp.ne.s32.totalorder %s40, %s56
      %p58 = scmp.eq.s32.totalorder %s32, 0
      %p59 = por %p57, %p58
      %s61 = sadd.s32 %s60, 1
      %p64 = scmp.eq.s32.totalorder %s26, 1
      %p65 = scmp.ne.s32.totalorder %s60, %s62
      %p66 = scmp.eq.s32.totalorder %s26, 0
      %p67 = por %p65, %p66
      %p68 = scmp.ne.s32.totalorder %s60, %s62
      %p69 = scmp.eq.s32.totalorder %s31, 1
      %p70 = por %p68, %p69
      %p71 = scmp.ne.s32.totalorder %s62, %s63
      %p72 = scmp.eq.s32.totalorder %s31, 0
      %p73 = por %p71, %p72
      %p74 = scmp.ne.s32.totalorder %s62, %s63
      %p75 = scmp.eq.s32.totalorder %s32, 1
      %p76 = por %p74, %p75
      %p78 = scmp.ne.s32.totalorder %s63, %s77
      %p79 = scmp.eq.s32.totalorder %s32, 0
      %p80 = por %p78, %p79
      %s82 = sadd.s32 %s81, 1
      %p85 = scmp.eq.s32.totalorder %s26, 1
      %p86 = scmp.ne.s32.totalorder %s81, %s83
      %p87 = scmp.eq.s32.totalorder %s26, 0
      %p88 = por %p86, %p87
      %p89 = scmp.ne.s32.totalorder %s81, %s83
      %p90 = scmp.eq.s32.totalorder %s31, 1
      %p91 = por %p89, %p90
      %p92 = scmp.ne.s32.totalorder %s83, %s84
      %p93 = scmp.eq.s32.totalorder %s31, 0
      %p94 = por %p92, %p93
      %p95 = scmp.ne.s32.totalorder %s83, %s84
      %p96 = scmp.eq.s32.totalorder %s32, 1
      %p97 = por %p95, %p96
      %p99 = scmp.ne.s32.totalorder %s84, %s98
      %p100 = scmp.eq.s32.totalorder %s32, 0
      %p101 = por %p99, %p100
      %s103 = sadd.s32 %s102, 1
      %p106 = scmp.eq.s32.totalorder %s26, 1
      %p107 = scmp.ne.s32.totalorder %s102, %s104
      %p108 = scmp.eq.s32.totalorder %s26, 0
      %p109 = por %p107, %p108
      %p110 = scmp.ne.s32.totalorder %s102, %s104
      %p111 = scmp.eq.s32.totalorder %s31, 1
      %p112 = por %p110, %p111
      %p113 = scmp.ne.s32.totalorder %s104, %s105
      %p114 = scmp.eq.s32.totalorder %s31, 0
      %p115 = por %p113, %p114
      %p116 = scmp.ne.s32.totalorder %s104, %s105
      %p117 = scmp.eq.s32.totalorder %s32, 1
      %p118 = por %p116, %p117
      %p120 = scmp.ne.s32.totalorder %s105, %s119
      %p121 = scmp.eq.s32.totalorder %s32, 0
      %p122 = por %p120, %p121
      %s124 = sadd.s32 %s123, 1
      %p127 = scmp.eq.s32.totalorder %s26, 1
      %p128 = scmp.ne.s32.totalorder %s123, %s125
      %p129 = scmp.eq.s32.totalorder %s26, 0
      %p130 = por %p128, %p129
      %p131 = scmp.ne.s32.totalorder %s123, %s125
      %p132 = scmp.eq.s32.totalorder %s31, 1
      %p133 = por %p131, %p132
      %p134 = scmp.ne.s32.totalorder %s125, %s126
      %p135 = scmp.eq.s32.totalorder %s31, 0
      %p136 = por %p134, %p135
      %p137 = scmp.ne.s32.totalorder %s125, %s126
      %p138 = scmp.eq.s32.totalorder %s32, 1
      %p139 = por %p137, %p138
      %p141 = scmp.ne.s32.totalorder %s126, %s140
      %p142 = scmp.eq.s32.totalorder %s32, 0
      %p143 = por %p141, %p142
      %s145 = sadd.s32 %s144, 1
      %p148 = scmp.eq.s32.totalorder %s26, 1
      %p149 = scmp.ne.s32.totalorder %s144, %s146
      %p150 = scmp.eq.s32.totalorder %s26, 0
      %p151 = por %p149, %p150
      %p152 = scmp.ne.s32.totalorder %s144, %s146
      %p153 = scmp.eq.s32.totalorder %s31, 1
      %p154 = por %p152, %p153
      %p155 = scmp.ne.s32.totalorder %s146, %s147
      %p156 = scmp.eq.s32.totalorder %s31, 0
      %p157 = por %p155, %p156
      %p158 = scmp.ne.s32.totalorder %s146, %s147
      %p159 = scmp.eq.s32.totalorder %s32, 1
      %p160 = por %p158, %p159
      %p162 = scmp.ne.s32.totalorder %s147, %s161
      %p163 = scmp.eq.s32.totalorder %s32, 0
      %p164 = por %p162, %p163
      %s166 = sadd.s32 %s165, 1
      %p169 = scmp.eq.s32.totalorder %s26, 1
      %p170 = scmp.ne.s32.totalorder %s165, %s167
      %p171 = scmp.eq.s32.totalorder %s26, 0
      %p172 = por %p170, %p171
      %p173 = scmp.ne.s32.totalorder %s165, %s167
      %p174 = scmp.eq.s32.totalorder %s31, 1
      %p175 = por %p173, %p174
      %p176 = scmp.ne.s32.totalorder %s167, %s168
      %p177 = scmp.eq.s32.totalorder %s31, 0
      %p178 = por %p176, %p177
      %p179 = scmp.ne.s32.totalorder %s167, %s168
      %p180 = scmp.eq.s32.totalorder %s32, 1
      %p181 = por %p179, %p180
      %p183 = scmp.ne.s32.totalorder %s168, %s182
      %p184 = scmp.eq.s32.totalorder %s32, 0
      %p185 = por %p183, %p184
      %s186 = ssub.s32 %s26, %s33
      %p187 = scmp.eq.s32.totalorder %s186, 0
      %s189 = sadd.s32 %s188, 1
      %s190 = scalar_select %p187, %s188, %s189
      %p193 = pneg %p187
      %p194 = scmp.eq.s32.totalorder %s26, 1
      %p195 = por %p193, %p194
      %p196 = scmp.ne.s32.totalorder %s188, %s191
      %p197 = scmp.eq.s32.totalorder %s26, 0
      %p198 = por %p196, %p197
      %p199 = scmp.ne.s32.totalorder %s188, %s191
      %p200 = scmp.eq.s32.totalorder %s31, 1
      %p201 = por %p199, %p200
      %p202 = scmp.ne.s32.totalorder %s191, %s192
      %p203 = scmp.eq.s32.totalorder %s31, 0
      %p204 = por %p202, %p203
      %p205 = scmp.ne.s32.totalorder %s191, %s192
      %p206 = scmp.eq.s32.totalorder %s32, 1
      %p207 = por %p205, %p206
      %p209 = scmp.ne.s32.totalorder %s192, %s208
      %p210 = scmp.eq.s32.totalorder %s32, 0
      %p211 = por %p209, %p210
      %s212 = ssub.s32 %s26, %s33
      %p213 = scmp.eq.s32.totalorder %s212, 0
      %s215 = sadd.s32 %s214, 1
      %s216 = scalar_select %p213, %s214, %s215
      %p219 = pneg %p213
      %p220 = scmp.eq.s32.totalorder %s26, 1
      %p221 = por %p219, %p220
      %p222 = scmp.ne.s32.totalorder %s214, %s217
      %p223 = scmp.eq.s32.totalorder %s26, 0
      %p224 = por %p222, %p223
      %p225 = scmp.ne.s32.totalorder %s214, %s217
      %p226 = scmp.eq.s32.totalorder %s31, 1
      %p227 = por %p225, %p226
      %p228 = scmp.ne.s32.totalorder %s217, %s218
      %p229 = scmp.eq.s32.totalorder %s31, 0
      %p230 = por %p228, %p229
      %p231 = scmp.ne.s32.totalorder %s217, %s218
      %p232 = scmp.eq.s32.totalorder %s32, 1
      %p233 = por %p231, %p232
      %p235 = scmp.ne.s32.totalorder %s218, %s234
      %p236 = scmp.eq.s32.totalorder %s32, 0
      %p237 = por %p235, %p236
      %p238 = scmp.le.s32.totalorder 1, %s26
      %p239 = scmp.lt.s32.totalorder %s26, 3
      %p240 = pnand %p238, %p239
      %p241 = pneg %p240
      // Predicated region
      $region9: #{tpu_custom_call.1} parent=5 // pred_check
        _
      $region10: #{tpu_custom_call.1} parent=5 // pred_check_branch
        %243 = sbr.rel (%p240) target = $region12
      $region11: #{tpu_custom_call.1} parent=5 // pred_region
        %s244 = ssub.s32 %s26, 1
        // Predicated region
        $region13: #{tpu_custom_call.1} parent=11 // pred_check
          %p245 = pneg %p73
        $region14: #{tpu_custom_call.1} parent=11 // pred_check_branch
          %247 = sbr.rel (%p245) target = $region16
        $region15: #{tpu_custom_call.1} parent=11 // pred_region
          %s249 = ssub.s32 6144, 6144
          %250 = vsyncadd [#allocation6], %s249
          %s251 = sshll.u32 [#allocation5], 4
          %s252 = int_to_ptr.vmem [resolvable:$true] %s251
          %257 = dma.hbm_to_vmem [thread:$0]  %s1, 6144, %s252, [#allocation6], 64, 64, 4
        $region16: #{tpu_custom_call.1} parent=11 // pred_fallthru
          _
        // Predicated region
        $region17: #{tpu_custom_call.1} parent=11 // pred_check
          %p258 = pneg %p94
        $region18: #{tpu_custom_call.1} parent=11 // pred_check_branch
          %260 = sbr.rel (%p258) target = $region20
        $region19: #{tpu_custom_call.1} parent=11 // pred_region
          _
        $region20: #{tpu_custom_call.1} parent=11 // pred_fallthru
          _
        // Predicated region
        $region21: #{tpu_custom_call.1} parent=11 // pred_check
          %p261 = pneg %p115
        $region22: #{tpu_custom_call.1} parent=11 // pred_check_branch
          %263 = sbr.rel (%p261) target = $region24
        $region23: #{tpu_custom_call.1} parent=11 // pred_region
          %s265 = ssub.s32 1024, 1024
          %266 = vsyncadd [#allocation6], %s265
          %s267 = sshll.u32 [#allocation7], 4
          %s268 = int_to_ptr.vmem [resolvable:$true] %s267
          %273 = dma.hbm_to_vmem [thread:$0]  %s3, 1024, %s268, [#allocation6], 64, 64, 4
        $region24: #{tpu_custom_call.1} parent=11 // pred_fallthru
          _
        // Predicated region
        $region25: #{tpu_custom_call.1} parent=11 // pred_check
          %p274 = pneg %p136
        $region26: #{tpu_custom_call.1} parent=11 // pred_check_branch
          %276 = sbr.rel (%p274) target = $region28
        $region27: #{tpu_custom_call.1} parent=11 // pred_region
          _
        $region28: #{tpu_custom_call.1} parent=11 // pred_fallthru
          _
        // Predicated region
        $region29: #{tpu_custom_call.1} parent=11 // pred_check
          %p277 = pneg %p157
        $region30: #{tpu_custom_call.1} parent=11 // pred_check_branch
          %279 = sbr.rel (%p277) target = $region32
        $region31: #{tpu_custom_call.1} parent=11 // pred_region
          %s281 = ssub.s32 1024, 1024
          %282 = vsyncadd [#allocation9], %s281
          %s283 = sshll.u32 [#allocation8], 4
          %s284 = int_to_ptr.vmem [resolvable:$true] %s283
          %289 = dma.hbm_to_vmem [thread:$0]  %s5, 1024, %s284, [#allocation9], 64, 64, 4
        $region32: #{tpu_custom_call.1} parent=11 // pred_fallthru
          _
        // Predicated region
        $region33: #{tpu_custom_call.1} parent=11 // pred_check
          %p290 = pneg %p178
        $region34: #{tpu_custom_call.1} parent=11 // pred_check_branch
          %292 = sbr.rel (%p290) target = $region36
        $region35: #{tpu_custom_call.1} parent=11 // pred_region
          _
        $region36: #{tpu_custom_call.1} parent=11 // pred_fallthru
          _
      $region12: #{tpu_custom_call.1} parent=5 // pred_fallthru
        _
      %p293 = scmp.lt.s32.totalorder %s26, 2
      // Predicated region
      $region37: #{tpu_custom_call.1} parent=5 // pred_check
        %p294 = pneg %p293
      $region38: #{tpu_custom_call.1} parent=5 // pred_check_branch
        %296 = sbr.rel (%p294) target = $region40
      $region39: #{tpu_custom_call.1} parent=5 // pred_region
        // Predicated region
        $region41: #{tpu_custom_call.1} parent=39 // pred_check
          %p297 = pneg %p46
        $region42: #{tpu_custom_call.1} parent=39 // pred_check_branch
          %299 = sbr.rel (%p297) target = $region44
        $region43: #{tpu_custom_call.1} parent=39 // pred_region
          %s300 = sand.u32 %s36, 1
          %s301 = scalar_lea.sflag [#allocation3], %s300
          %s302 = sand.u32 %s36, 1
          %s303 = smul.addr %s302, 48
          %s304 = scalar_lea.vmem [#allocation2], %s303
          %s305 = smul.u32 2, %s26
          %s307 = ssub.s32 768, 768
          %308 = vsyncadd %s301, %s307
          %s309 = smul.addr %s305, 6
          %s310 = smul.addr %s309, 64
          %s311 = scalar_lea.hbm %s0, %s310
          %s312 = sshll.u32 %s304, 4
          %s313 = int_to_ptr.vmem [resolvable:$true] %s312
          %318 = dma.hbm_to_vmem [thread:$0]  %s311, 768, %s313, %s301, 384, 384, 24
        $region44: #{tpu_custom_call.1} parent=39 // pred_fallthru
          _
      $region40: #{tpu_custom_call.1} parent=5 // pred_fallthru
        _
      %p319 = scmp.le.s32.totalorder 1, %s26
      %p320 = scmp.lt.s32.totalorder %s26, 3
      %p321 = pnand %p319, %p320
      %p322 = pneg %p321
      // Predicated region
      $region45: #{tpu_custom_call.1} parent=5 // pred_check
        _
      $region46: #{tpu_custom_call.1} parent=5 // pred_check_branch
        %324 = sbr.rel (%p321) target = $region48
      $region47: #{tpu_custom_call.1} parent=5 // pred_region
        %s325 = ssub.s32 %s26, 1
        %s326 = sand.u32 %s39, 1
        %s327 = scalar_lea.sflag [#allocation3], %s326
        %s328 = sand.u32 %s39, 1
        %s329 = smul.addr %s328, 48
        %s330 = scalar_lea.vmem [#allocation2], %s329
        // Predicated region
        $region49: #{tpu_custom_call.1} parent=47 // pred_check
          %p331 = pneg %p52
        $region50: #{tpu_custom_call.1} parent=47 // pred_check_branch
          %333 = sbr.rel (%p331) target = $region52
        $region51: #{tpu_custom_call.1} parent=47 // pred_region
          %334 = dma.done %s327, 768
        $region52: #{tpu_custom_call.1} parent=47 // pred_fallthru
          _
        // Predicated region
        $region53: #{tpu_custom_call.1} parent=47 // pred_check
          %p335 = pneg %p73
        $region54: #{tpu_custom_call.1} parent=47 // pred_check_branch
          %337 = sbr.rel (%p335) target = $region56
        $region55: #{tpu_custom_call.1} parent=47 // pred_region
          %338 = dma.done [#allocation6], 6144
        $region56: #{tpu_custom_call.1} parent=47 // pred_fallthru
          _
        // Predicated region
        $region57: #{tpu_custom_call.1} parent=47 // pred_check
          %p339 = pneg %p115
        $region58: #{tpu_custom_call.1} parent=47 // pred_check_branch
          %341 = sbr.rel (%p339) target = $region60
        $region59: #{tpu_custom_call.1} parent=47 // pred_region
          %342 = dma.done [#allocation6], 1024
        $region60: #{tpu_custom_call.1} parent=47 // pred_fallthru
          _
        // Predicated region
        $region61: #{tpu_custom_call.1} parent=47 // pred_check
          %p343 = pneg %p157
        $region62: #{tpu_custom_call.1} parent=47 // pred_check_branch
          %345 = sbr.rel (%p343) target = $region64
        $region63: #{tpu_custom_call.1} parent=47 // pred_region
          %346 = dma.done [#allocation9], 1024
        $region64: #{tpu_custom_call.1} parent=47 // pred_fallthru
          _
        %s347 = sand.u32 %s39, 1
        %s348 = scalar_lea.sflag [#allocation3], %s347
        %s349 = sand.u32 %s39, 1
        %s350 = smul.addr %s349, 48
        %s351 = scalar_lea.vmem [#allocation2], %s350
        %p352 = pneg %p52
        %p353 = pneg %p49
        %p354 = pneg %p73
        %p355 = pneg %p70
        %p356 = pneg %p94
        %p357 = pneg %p91
        %p358 = pneg %p115
        %p359 = pneg %p112
        %p360 = pneg %p136
        %p361 = pneg %p133
        %p362 = pneg %p157
        %p363 = pneg %p154
        %p364 = pneg %p178
        %p365 = pneg %p175
        %p366 = pneg %p204
        %p367 = pneg %p201
        %s368 = sand.u32 %s191, 1
        %s369 = scalar_lea.sflag [#allocation4], %s368
        %s370 = sand.u32 %s191, 1
        %s371 = smul.addr %s370, 8
        %s372 = scalar_lea.vmem [#allocation10], %s371
        %p373 = pneg %p230
        %p374 = pneg %p227
        %s375 = sand.u32 %s217, 1
        %s376 = scalar_lea.sflag [#allocation12], %s375
        %s377 = sand.u32 %s217, 1
        %s378 = smul.addr %s377, 16
        %s379 = scalar_lea.vmem [#allocation11], %s378
        %s380 = smul.u32 2, %s31
        %s381 = smul.u32 2, %s31
        %s382 = smul.u32 2, %s31
        %v384 = vld [vmem:[%s330] sm:$0xff]
        %v385 = vld [vmem:[%s330 + $0x8] sm:$0xff]
        %v386 = vld [vmem:[%s330 + $0x10] sm:$0xff]
        %v387 = vld [vmem:[%s330 + $0x18] sm:$0xff]
        %v388 = vld [vmem:[%s330 + $0x20] sm:$0xff]
        %v389 = vld [vmem:[%s330 + $0x28] sm:$0xff]
        %v390 = vld [vmem:[#allocation5] sm:$0xf]
        %v391 = vld [vmem:[#allocation5 + $0x4] sm:$0xf]
        %v392 = vld [vmem:[#allocation5 + $0x8] sm:$0xf]
        %v393 = vld [vmem:[#allocation5 + $0xc] sm:$0xf]
        %v394 = vld [vmem:[#allocation5 + $0x10] sm:$0xf]
        %v395 = vld [vmem:[#allocation5 + $0x14] sm:$0xf]
        %v396 = vld [vmem:[#allocation5 + $0x18] sm:$0xf]
        %v397 = vld [vmem:[#allocation5 + $0x1c] sm:$0xf]
        %v398 = vld [vmem:[#allocation5 + $0x20] sm:$0xf]
        %v399 = vld [vmem:[#allocation5 + $0x24] sm:$0xf]
        %v400 = vld [vmem:[#allocation5 + $0x28] sm:$0xf]
        %v401 = vld [vmem:[#allocation5 + $0x2c] sm:$0xf]
        %v402 = vld [vmem:[#allocation5 + $0x30] sm:$0xf]
        %v403 = vld [vmem:[#allocation5 + $0x34] sm:$0xf]
        %v404 = vld [vmem:[#allocation5 + $0x38] sm:$0xf]
        %v405 = vld [vmem:[#allocation5 + $0x3c] sm:$0xf]
        %v406 = vld [vmem:[#allocation5 + $0x40] sm:$0xf]
        %v407 = vld [vmem:[#allocation5 + $0x44] sm:$0xf]
        %v408 = vld [vmem:[#allocation5 + $0x48] sm:$0xf]
        %v409 = vld [vmem:[#allocation5 + $0x4c] sm:$0xf]
        %v410 = vld [vmem:[#allocation5 + $0x50] sm:$0xf]
        %v411 = vld [vmem:[#allocation5 + $0x54] sm:$0xf]
        %v412 = vld [vmem:[#allocation5 + $0x58] sm:$0xf]
        %v413 = vld [vmem:[#allocation5 + $0x5c] sm:$0xf]
        %v414 = vld [vmem:[#allocation5 + $0x60] sm:$0xf]
        %v415 = vld [vmem:[#allocation5 + $0x64] sm:$0xf]
        %v416 = vld [vmem:[#allocation5 + $0x68] sm:$0xf]
        %v417 = vld [vmem:[#allocation5 + $0x6c] sm:$0xf]
        %v418 = vld [vmem:[#allocation5 + $0x70] sm:$0xf]
        %v419 = vld [vmem:[#allocation5 + $0x74] sm:$0xf]
        %v420 = vld [vmem:[#allocation5 + $0x78] sm:$0xf]
        %v421 = vld [vmem:[#allocation5 + $0x7c] sm:$0xf]
        %v422 = vld [vmem:[#allocation5 + $0x80] sm:$0xf]
        %v423 = vld [vmem:[#allocation5 + $0x84] sm:$0xf]
        %v424 = vld [vmem:[#allocation5 + $0x88] sm:$0xf]
        %v425 = vld [vmem:[#allocation5 + $0x8c] sm:$0xf]
        %v426 = vld [vmem:[#allocation5 + $0x90] sm:$0xf]
        %v427 = vld [vmem:[#allocation5 + $0x94] sm:$0xf]
        %v428 = vld [vmem:[#allocation5 + $0x98] sm:$0xf]
        %v429 = vld [vmem:[#allocation5 + $0x9c] sm:$0xf]
        %v430 = vld [vmem:[#allocation5 + $0xa0] sm:$0xf]
        %v431 = vld [vmem:[#allocation5 + $0xa4] sm:$0xf]
        %v432 = vld [vmem:[#allocation5 + $0xa8] sm:$0xf]
        %v433 = vld [vmem:[#allocation5 + $0xac] sm:$0xf]
        %v434 = vld [vmem:[#allocation5 + $0xb0] sm:$0xf]
        %v435 = vld [vmem:[#allocation5 + $0xb4] sm:$0xf]
        %v436 = vld [vmem:[#allocation5 + $0xb8] sm:$0xf]
        %v437 = vld [vmem:[#allocation5 + $0xbc] sm:$0xf]
        %v438 = vld [vmem:[#allocation5 + $0xc0] sm:$0xf]
        %v439 = vld [vmem:[#allocation5 + $0xc4] sm:$0xf]
        %v440 = vld [vmem:[#allocation5 + $0xc8] sm:$0xf]
        %v441 = vld [vmem:[#allocation5 + $0xcc] sm:$0xf]
        %v442 = vld [vmem:[#allocation5 + $0xd0] sm:$0xf]
        %v443 = vld [vmem:[#allocation5 + $0xd4] sm:$0xf]
        %v444 = vld [vmem:[#allocation5 + $0xd8] sm:$0xf]
        %v445 = vld [vmem:[#allocation5 + $0xdc] sm:$0xf]
        %v446 = vld [vmem:[#allocation5 + $0xe0] sm:$0xf]
        %v447 = vld [vmem:[#allocation5 + $0xe4] sm:$0xf]
        %v448 = vld [vmem:[#allocation5 + $0xe8] sm:$0xf]
        %v449 = vld [vmem:[#allocation5 + $0xec] sm:$0xf]
        %v450 = vld [vmem:[#allocation5 + $0xf0] sm:$0xf]
        %v451 = vld [vmem:[#allocation5 + $0xf4] sm:$0xf]
        %v452 = vld [vmem:[#allocation5 + $0xf8] sm:$0xf]
        %v453 = vld [vmem:[#allocation5 + $0xfc] sm:$0xf]
        %v454 = vld [vmem:[#allocation5 + $0x100] sm:$0xf]
        %v455 = vld [vmem:[#allocation5 + $0x104] sm:$0xf]
        %v456 = vld [vmem:[#allocation5 + $0x108] sm:$0xf]
        %v457 = vld [vmem:[#allocation5 + $0x10c] sm:$0xf]
        %v458 = vld [vmem:[#allocation5 + $0x110] sm:$0xf]
        %v459 = vld [vmem:[#allocation5 + $0x114] sm:$0xf]
        %v460 = vld [vmem:[#allocation5 + $0x118] sm:$0xf]
        %v461 = vld [vmem:[#allocation5 + $0x11c] sm:$0xf]
        %v462 = vld [vmem:[#allocation5 + $0x120] sm:$0xf]
        %v463 = vld [vmem:[#allocation5 + $0x124] sm:$0xf]
        %v464 = vld [vmem:[#allocation5 + $0x128] sm:$0xf]
        %v465 = vld [vmem:[#allocation5 + $0x12c] sm:$0xf]
        %v466 = vld [vmem:[#allocation5 + $0x130] sm:$0xf]
        %v467 = vld [vmem:[#allocation5 + $0x134] sm:$0xf]
        %v468 = vld [vmem:[#allocation5 + $0x138] sm:$0xf]
        %v469 = vld [vmem:[#allocation5 + $0x13c] sm:$0xf]
        %v470 = vld [vmem:[#allocation5 + $0x140] sm:$0xf]
        %v471 = vld [vmem:[#allocation5 + $0x144] sm:$0xf]
        %v472 = vld [vmem:[#allocation5 + $0x148] sm:$0xf]
        %v473 = vld [vmem:[#allocation5 + $0x14c] sm:$0xf]
        %v474 = vld [vmem:[#allocation5 + $0x150] sm:$0xf]
        %v475 = vld [vmem:[#allocation5 + $0x154] sm:$0xf]
        %v476 = vld [vmem:[#allocation5 + $0x158] sm:$0xf]
        %v477 = vld [vmem:[#allocation5 + $0x15c] sm:$0xf]
        %v478 = vld [vmem:[#allocation5 + $0x160] sm:$0xf]
        %v479 = vld [vmem:[#allocation5 + $0x164] sm:$0xf]
        %v480 = vld [vmem:[#allocation5 + $0x168] sm:$0xf]
        %v481 = vld [vmem:[#allocation5 + $0x16c] sm:$0xf]
        %v482 = vld [vmem:[#allocation5 + $0x170] sm:$0xf]
        %v483 = vld [vmem:[#allocation5 + $0x174] sm:$0xf]
        %v484 = vld [vmem:[#allocation5 + $0x178] sm:$0xf]
        %v485 = vld [vmem:[#allocation5 + $0x17c] sm:$0xf]
        %v486 = vld [vmem:[%s2] sm:$0x1]
        %v488 = vlaneseq
        %v489 = vshrl.u32 %v488, 7
        %v490 = vsub.s32 0, %v489
        %v491 = vrot.slane %v486, %v490
        %v499 = vunpack.c.l.b16 %v384
        %v500 = vunpack.c.h.b16 %v384
        %v501 = vunpack.c.l.b16 %v385
        %v502 = vunpack.c.h.b16 %v385
        %v503 = vunpack.c.l.b16 %v386
        %v504 = vunpack.c.h.b16 %v386
        %v505 = vunpack.c.l.b16 %v387
        %v506 = vunpack.c.h.b16 %v387
        %v507 = vunpack.c.l.b16 %v388
        %v508 = vunpack.c.h.b16 %v388
        %v509 = vunpack.c.l.b16 %v389
        %v510 = vunpack.c.h.b16 %v389
        %v511 = vpack.c.b16 %v505, %v499
        %v512 = vpack.c.b16 %v506, %v500
        %v513 = vpack.c.b16 %v507, %v501
        %v514 = vpack.c.b16 %v508, %v502
        %v515 = vpack.c.b16 %v509, %v503
        %v516 = vpack.c.b16 %v510, %v504
        %v619 = vunpack.c.l.b16 %v390
        %v620 = vunpack.c.l.b16 %v391
        %v621 = vunpack.c.l.b16 %v392
        %v622 = vunpack.c.l.b16 %v393
        %v623 = vunpack.c.l.b16 %v394
        %v624 = vunpack.c.l.b16 %v395
        %v625 = vunpack.c.l.b16 %v396
        %v626 = vunpack.c.l.b16 %v397
        %v627 = vunpack.c.l.b16 %v398
        %v628 = vunpack.c.l.b16 %v399
        %v629 = vunpack.c.l.b16 %v400
        %v630 = vunpack.c.l.b16 %v401
        %v631 = vunpack.c.l.b16 %v402
        %v632 = vunpack.c.l.b16 %v403
        %v633 = vunpack.c.l.b16 %v404
        %v634 = vunpack.c.l.b16 %v405
        %v635 = vunpack.c.l.b16 %v406
        %v636 = vunpack.c.l.b16 %v407
        %v637 = vunpack.c.l.b16 %v408
        %v638 = vunpack.c.l.b16 %v409
        %v639 = vunpack.c.l.b16 %v410
        %v640 = vunpack.c.l.b16 %v411
        %v641 = vunpack.c.l.b16 %v412
        %v642 = vunpack.c.l.b16 %v413
        %v643 = vunpack.c.l.b16 %v414
        %v644 = vunpack.c.l.b16 %v415
        %v645 = vunpack.c.l.b16 %v416
        %v646 = vunpack.c.l.b16 %v417
        %v647 = vunpack.c.l.b16 %v418
        %v648 = vunpack.c.l.b16 %v419
        %v649 = vunpack.c.l.b16 %v420
        %v650 = vunpack.c.l.b16 %v421
        %v651 = vunpack.c.l.b16 %v422
        %v652 = vunpack.c.l.b16 %v423
        %v653 = vunpack.c.l.b16 %v424
        %v654 = vunpack.c.l.b16 %v425
        %v655 = vunpack.c.l.b16 %v426
        %v656 = vunpack.c.l.b16 %v427
        %v657 = vunpack.c.l.b16 %v428
        %v658 = vunpack.c.l.b16 %v429
        %v659 = vunpack.c.l.b16 %v430
        %v660 = vunpack.c.l.b16 %v431
        %v661 = vunpack.c.l.b16 %v432
        %v662 = vunpack.c.l.b16 %v433
        %v663 = vunpack.c.l.b16 %v434
        %v664 = vunpack.c.l.b16 %v435
        %v665 = vunpack.c.l.b16 %v436
        %v666 = vunpack.c.l.b16 %v437
        %v667 = vunpack.c.l.b16 %v438
        %v668 = vunpack.c.l.b16 %v439
        %v669 = vunpack.c.l.b16 %v440
        %v670 = vunpack.c.l.b16 %v441
        %v671 = vunpack.c.l.b16 %v442
        %v672 = vunpack.c.l.b16 %v443
        %v673 = vunpack.c.l.b16 %v444
        %v674 = vunpack.c.l.b16 %v445
        %v675 = vunpack.c.l.b16 %v446
        %v676 = vunpack.c.l.b16 %v447
        %v677 = vunpack.c.l.b16 %v448
        %v678 = vunpack.c.l.b16 %v449
        %v679 = vunpack.c.l.b16 %v450
        %v680 = vunpack.c.l.b16 %v451
        %v681 = vunpack.c.l.b16 %v452
        %v682 = vunpack.c.l.b16 %v453
        %v683 = vunpack.c.l.b16 %v454
        %v684 = vunpack.c.l.b16 %v455
        %v685 = vunpack.c.l.b16 %v456
        %v686 = vunpack.c.l.b16 %v457
        %v687 = vunpack.c.l.b16 %v458
        %v688 = vunpack.c.l.b16 %v459
        %v689 = vunpack.c.l.b16 %v460
        %v690 = vunpack.c.l.b16 %v461
        %v691 = vunpack.c.l.b16 %v462
        %v692 = vunpack.c.l.b16 %v463
        %v693 = vunpack.c.l.b16 %v464
        %v694 = vunpack.c.l.b16 %v465
        %v695 = vunpack.c.l.b16 %v466
        %v696 = vunpack.c.l.b16 %v467
        %v697 = vunpack.c.l.b16 %v468
        %v698 = vunpack.c.l.b16 %v469
        %v699 = vunpack.c.l.b16 %v470
        %v700 = vunpack.c.l.b16 %v471
        %v701 = vunpack.c.l.b16 %v472
        %v702 = vunpack.c.l.b16 %v473
        %v703 = vunpack.c.l.b16 %v474
        %v704 = vunpack.c.l.b16 %v475
        %v705 = vunpack.c.l.b16 %v476
        %v706 = vunpack.c.l.b16 %v477
        %v707 = vunpack.c.l.b16 %v478
        %v708 = vunpack.c.l.b16 %v479
        %v709 = vunpack.c.l.b16 %v480
        %v710 = vunpack.c.l.b16 %v481
        %v711 = vunpack.c.l.b16 %v482
        %v712 = vunpack.c.l.b16 %v483
        %v713 = vunpack.c.l.b16 %v484
        %v714 = vunpack.c.l.b16 %v485
        %v715 = vpack.c.b16 %v620, %v619
        %v716 = vpack.c.b16 %v622, %v621
        %v717 = vpack.c.b16 %v624, %v623
        %v718 = vpack.c.b16 %v626, %v625
        %v719 = vpack.c.b16 %v628, %v627
        %v720 = vpack.c.b16 %v630, %v629
        %v721 = vpack.c.b16 %v632, %v631
        %v722 = vpack.c.b16 %v634, %v633
        %v723 = vpack.c.b16 %v636, %v635
        %v724 = vpack.c.b16 %v638, %v637
        %v725 = vpack.c.b16 %v640, %v639
        %v726 = vpack.c.b16 %v642, %v641
        %v727 = vpack.c.b16 %v644, %v643
        %v728 = vpack.c.b16 %v646, %v645
        %v729 = vpack.c.b16 %v648, %v647
        %v730 = vpack.c.b16 %v650, %v649
        %v731 = vpack.c.b16 %v652, %v651
        %v732 = vpack.c.b16 %v654, %v653
        %v733 = vpack.c.b16 %v656, %v655
        %v734 = vpack.c.b16 %v658, %v657
        %v735 = vpack.c.b16 %v660, %v659
        %v736 = vpack.c.b16 %v662, %v661
        %v737 = vpack.c.b16 %v664, %v663
        %v738 = vpack.c.b16 %v666, %v665
        %v739 = vpack.c.b16 %v668, %v667
        %v740 = vpack.c.b16 %v670, %v669
        %v741 = vpack.c.b16 %v672, %v671
        %v742 = vpack.c.b16 %v674, %v673
        %v743 = vpack.c.b16 %v676, %v675
        %v744 = vpack.c.b16 %v678, %v677
        %v745 = vpack.c.b16 %v680, %v679
        %v746 = vpack.c.b16 %v682, %v681
        %v747 = vpack.c.b16 %v684, %v683
        %v748 = vpack.c.b16 %v686, %v685
        %v749 = vpack.c.b16 %v688, %v687
        %v750 = vpack.c.b16 %v690, %v689
        %v751 = vpack.c.b16 %v692, %v691
        %v752 = vpack.c.b16 %v694, %v693
        %v753 = vpack.c.b16 %v696, %v695
        %v754 = vpack.c.b16 %v698, %v697
        %v755 = vpack.c.b16 %v700, %v699
        %v756 = vpack.c.b16 %v702, %v701
        %v757 = vpack.c.b16 %v704, %v703
        %v758 = vpack.c.b16 %v706, %v705
        %v759 = vpack.c.b16 %v708, %v707
        %v760 = vpack.c.b16 %v710, %v709
        %v761 = vpack.c.b16 %v712, %v711
        %v762 = vpack.c.b16 %v714, %v713
        %811 = vmatprep.subr.bf16.mxu0 0
        %812 = vmatpush1.bf16.msra.mxu0 %v715
        %813 = vmatprep.subr.bf16.mxu0 0
        %814 = vmatpush1.bf16.msra.mxu0 %v716
        %815 = vmatprep.subr.bf16.mxu0 0
        %816 = vmatpush1.bf16.msra.mxu0 %v717
        %817 = vmatprep.subr.bf16.mxu0 0
        %818 = vmatpush1.bf16.msra.mxu0 %v718
        %819 = vmatprep.subr.bf16.mxu0 0
        %820 = vmatpush1.bf16.msra.mxu0 %v719
        %821 = vmatprep.subr.bf16.mxu0 0
        %822 = vmatpush1.bf16.msra.mxu0 %v720
        %823 = vmatprep.subr.bf16.mxu0 0
        %824 = vmatpush1.bf16.msra.mxu0 %v721
        %825 = vmatprep.subr.bf16.mxu0 0
        %826 = vmatpush1.bf16.msra.mxu0 %v722
        %827 = vmatprep.subr.bf16.mxu0 0
        %828 = vmatpush1.bf16.msra.mxu0 %v723
        %829 = vmatprep.subr.bf16.mxu0 0
        %830 = vmatpush1.bf16.msra.mxu0 %v724
        %831 = vmatprep.subr.bf16.mxu0 0
        %832 = vmatpush1.bf16.msra.mxu0 %v725
        %833 = vmatprep.subr.bf16.mxu0 0
        %834 = vmatpush1.bf16.msra.mxu0 %v726
        %835 = vmatprep.subr.bf16.mxu0 0
        %836 = vmatpush1.bf16.msra.mxu0 %v727
        %837 = vmatprep.subr.bf16.mxu0 0
        %838 = vmatpush1.bf16.msra.mxu0 %v728
        %839 = vmatprep.subr.bf16.mxu0 0
        %840 = vmatpush1.bf16.msra.mxu0 %v729
        %841 = vmatprep.subr.bf16.mxu0 0
        %842 = vmatpush1.bf16.msra.mxu0 %v730
        %843 = vmatprep.mubr.bf16.mxu0 %v512
        %844 = vmatmul.mubr.bf16.gmra.mrb[0].mxu0 %v511
        %v845 = vpop.f32.mrb[0].mxu0
        %v846 = vadd.f32 %v491, %v845
        %v847 = vpop.f32.mrb[0].mxu0
        %v848 = vpop.f32.mrb[0].mxu0
        %v849 = vadd.f32 %v491, %v848
        %v850 = vpop.f32.mrb[0].mxu0
        %851 = vdwg.mxu0
        %852 = vmatprep.subr.bf16.mxu0 0
        %853 = vmatpush1.bf16.msra.mxu0 %v731
        %854 = vmatprep.subr.bf16.mxu0 0
        %855 = vmatpush1.bf16.msra.mxu0 %v732
        %856 = vmatprep.subr.bf16.mxu0 0
        %857 = vmatpush1.bf16.msra.mxu0 %v733
        %858 = vmatprep.subr.bf16.mxu0 0
        %859 = vmatpush1.bf16.msra.mxu0 %v734
        %860 = vmatprep.subr.bf16.mxu0 0
        %861 = vmatpush1.bf16.msra.mxu0 %v735
        %862 = vmatprep.subr.bf16.mxu0 0
        %863 = vmatpush1.bf16.msra.mxu0 %v736
        %864 = vmatprep.subr.bf16.mxu0 0
        %865 = vmatpush1.bf16.msra.mxu0 %v737
        %866 = vmatprep.subr.bf16.mxu0 0
        %867 = vmatpush1.bf16.msra.mxu0 %v738
        %868 = vmatprep.subr.bf16.mxu0 0
        %869 = vmatpush1.bf16.msra.mxu0 %v739
        %870 = vmatprep.subr.bf16.mxu0 0
        %871 = vmatpush1.bf16.msra.mxu0 %v740
        %872 = vmatprep.subr.bf16.mxu0 0
        %873 = vmatpush1.bf16.msra.mxu0 %v741
        %874 = vmatprep.subr.bf16.mxu0 0
        %875 = vmatpush1.bf16.msra.mxu0 %v742
        %876 = vmatprep.subr.bf16.mxu0 0
        %877 = vmatpush1.bf16.msra.mxu0 %v743
        %878 = vmatprep.subr.bf16.mxu0 0
        %879 = vmatpush1.bf16.msra.mxu0 %v744
        %880 = vmatprep.subr.bf16.mxu0 0
        %881 = vmatpush1.bf16.msra.mxu0 %v745
        %882 = vmatprep.subr.bf16.mxu0 0
        %883 = vmatpush1.bf16.msra.mxu0 %v746
        %884 = vmatprep.mubr.bf16.mxu0 %v514
        %885 = vmatmul.mubr.bf16.gmra.mrb[0].mxu0 %v513
        %v886 = vpop.f32.mrb[0].mxu0
        %v887 = vadd.f32 %v846, %v886
        %v888 = vpop.f32.mrb[0].mxu0
        %v889 = vpop.f32.mrb[0].mxu0
        %v890 = vadd.f32 %v849, %v889
        %v891 = vpop.f32.mrb[0].mxu0
        %892 = vdwg.mxu0
        %893 = vmatprep.subr.bf16.mxu0 0
        %894 = vmatpush1.bf16.msra.mxu0 %v747
        %895 = vmatprep.subr.bf16.mxu0 0
        %896 = vmatpush1.bf16.msra.mxu0 %v748
        %897 = vmatprep.subr.bf16.mxu0 0
        %898 = vmatpush1.bf16.msra.mxu0 %v749
        %899 = vmatprep.subr.bf16.mxu0 0
        %900 = vmatpush1.bf16.msra.mxu0 %v750
        %901 = vmatprep.subr.bf16.mxu0 0
        %902 = vmatpush1.bf16.msra.mxu0 %v751
        %903 = vmatprep.subr.bf16.mxu0 0
        %904 = vmatpush1.bf16.msra.mxu0 %v752
        %905 = vmatprep.subr.bf16.mxu0 0
        %906 = vmatpush1.bf16.msra.mxu0 %v753
        %907 = vmatprep.subr.bf16.mxu0 0
        %908 = vmatpush1.bf16.msra.mxu0 %v754
        %909 = vmatprep.subr.bf16.mxu0 0
        %910 = vmatpush1.bf16.msra.mxu0 %v755
        %911 = vmatprep.subr.bf16.mxu0 0
        %912 = vmatpush1.bf16.msra.mxu0 %v756
        %913 = vmatprep.subr.bf16.mxu0 0
        %914 = vmatpush1.bf16.msra.mxu0 %v757
        %915 = vmatprep.subr.bf16.mxu0 0
        %916 = vmatpush1.bf16.msra.mxu0 %v758
        %917 = vmatprep.subr.bf16.mxu0 0
        %918 = vmatpush1.bf16.msra.mxu0 %v759
        %919 = vmatprep.subr.bf16.mxu0 0
        %920 = vmatpush1.bf16.msra.mxu0 %v760
        %921 = vmatprep.subr.bf16.mxu0 0
        %922 = vmatpush1.bf16.msra.mxu0 %v761
        %923 = vmatprep.subr.bf16.mxu0 0
        %924 = vmatpush1.bf16.msra.mxu0 %v762
        %925 = vmatprep.mubr.bf16.mxu0 %v516
        %926 = vmatmul.mubr.bf16.gmra.mrb[0].mxu0 %v515
        %v927 = vpop.f32.mrb[0].mxu0
        %v928 = vadd.f32 %v887, %v927
        %v929 = vpop.f32.mrb[0].mxu0
        %v930 = vpop.f32.mrb[0].mxu0
        %v931 = vadd.f32 %v890, %v930
        %v932 = vpop.f32.mrb[0].mxu0
        %933 = vdwg.mxu0
        %v934 = vmax.f32 %v928, 0.0
        %v935 = vmax.f32 %v931, 0.0
        %v936 = vpack.c.bf16 %v935, %v934
        %v938 = vunpack.c.l.b16 %v936
        %v939 = vunpack.c.h.b16 %v936
        %v940 = vpack.c.b16 %v938, %v938
        %v941 = vpack.c.b16 %v939, %v939
        %944 = vst [vmem:[%s372] sm:$0xf] %v940
        %945 = vst [vmem:[%s372 + $0x4] sm:$0xf] %v941
        %v946 = vld [vmem:[#allocation7] sm:$0xf]
        %v947 = vld [vmem:[#allocation7 + $0x4] sm:$0xf]
        %v948 = vld [vmem:[#allocation7 + $0x8] sm:$0xf]
        %v949 = vld [vmem:[#allocation7 + $0xc] sm:$0xf]
        %v950 = vld [vmem:[#allocation7 + $0x10] sm:$0xf]
        %v951 = vld [vmem:[#allocation7 + $0x14] sm:$0xf]
        %v952 = vld [vmem:[#allocation7 + $0x18] sm:$0xf]
        %v953 = vld [vmem:[#allocation7 + $0x1c] sm:$0xf]
        %v954 = vld [vmem:[#allocation7 + $0x20] sm:$0xf]
        %v955 = vld [vmem:[#allocation7 + $0x24] sm:$0xf]
        %v956 = vld [vmem:[#allocation7 + $0x28] sm:$0xf]
        %v957 = vld [vmem:[#allocation7 + $0x2c] sm:$0xf]
        %v958 = vld [vmem:[#allocation7 + $0x30] sm:$0xf]
        %v959 = vld [vmem:[#allocation7 + $0x34] sm:$0xf]
        %v960 = vld [vmem:[#allocation7 + $0x38] sm:$0xf]
        %v961 = vld [vmem:[#allocation7 + $0x3c] sm:$0xf]
        %v962 = vld [vmem:[%s4] sm:$0x1]
        %v964 = vlaneseq
        %v965 = vshrl.u32 %v964, 7
        %v966 = vsub.s32 0, %v965
        %v967 = vrot.slane %v962, %v966
        %v985 = vunpack.c.l.b16 %v946
        %v986 = vunpack.c.l.b16 %v947
        %v987 = vunpack.c.l.b16 %v948
        %v988 = vunpack.c.l.b16 %v949
        %v989 = vunpack.c.l.b16 %v950
        %v990 = vunpack.c.l.b16 %v951
        %v991 = vunpack.c.l.b16 %v952
        %v992 = vunpack.c.l.b16 %v953
        %v993 = vunpack.c.l.b16 %v954
        %v994 = vunpack.c.l.b16 %v955
        %v995 = vunpack.c.l.b16 %v956
        %v996 = vunpack.c.l.b16 %v957
        %v997 = vunpack.c.l.b16 %v958
        %v998 = vunpack.c.l.b16 %v959
        %v999 = vunpack.c.l.b16 %v960
        %v1000 = vunpack.c.l.b16 %v961
        %v1001 = vpack.c.b16 %v986, %v985
        %v1002 = vpack.c.b16 %v988, %v987
        %v1003 = vpack.c.b16 %v990, %v989
        %v1004 = vpack.c.b16 %v992, %v991
        %v1005 = vpack.c.b16 %v994, %v993
        %v1006 = vpack.c.b16 %v996, %v995
        %v1007 = vpack.c.b16 %v998, %v997
        %v1008 = vpack.c.b16 %v1000, %v999
        %1017 = vmatprep.subr.bf16.mxu0 0
        %1018 = vmatpush1.bf16.msra.mxu0 %v1001
        %1019 = vmatprep.subr.bf16.mxu0 0
        %1020 = vmatpush1.bf16.msra.mxu0 %v1002
        %1021 = vmatprep.subr.bf16.mxu0 0
        %1022 = vmatpush1.bf16.msra.mxu0 %v1003
        %1023 = vmatprep.subr.bf16.mxu0 0
        %1024 = vmatpush1.bf16.msra.mxu0 %v1004
        %1025 = vmatprep.subr.bf16.mxu0 0
        %1026 = vmatpush1.bf16.msra.mxu0 %v1005
        %1027 = vmatprep.subr.bf16.mxu0 0
        %1028 = vmatpush1.bf16.msra.mxu0 %v1006
        %1029 = vmatprep.subr.bf16.mxu0 0
        %1030 = vmatpush1.bf16.msra.mxu0 %v1007
        %1031 = vmatprep.subr.bf16.mxu0 0
        %1032 = vmatpush1.bf16.msra.mxu0 %v1008
        %1033 = vmatprep.subr.bf16.mxu0 0
        %1034 = vmatpush1.bf16.msra.mxu0 0
        %1035 = vmatprep.subr.bf16.mxu0 0
        %1036 = vmatpush1.bf16.msra.mxu0 0
        %1037 = vmatprep.subr.bf16.mxu0 0
        %1038 = vmatpush1.bf16.msra.mxu0 0
        %1039 = vmatprep.subr.bf16.mxu0 0
        %1040 = vmatpush1.bf16.msra.mxu0 0
        %1041 = vmatprep.subr.bf16.mxu0 0
        %1042 = vmatpush1.bf16.msra.mxu0 0
        %1043 = vmatprep.subr.bf16.mxu0 0
        %1044 = vmatpush1.bf16.msra.mxu0 0
        %1045 = vmatprep.subr.bf16.mxu0 0
        %1046 = vmatpush1.bf16.msra.mxu0 0
        %1047 = vmatprep.subr.bf16.mxu0 0
        %1048 = vmatpush1.bf16.msra.mxu0 0
        %1049 = vmatprep.mubr.bf16.mxu0 0
        %1050 = vmatmul.mubr.bf16.gmra.mrb[0].mxu0 %v936
        %v1051 = vpop.f32.mrb[0].mxu0
        %v1052 = vadd.f32 %v967, %v1051
        %v1053 = vpop.f32.mrb[0].mxu0
        %v1054 = vpop.f32.mrb[0].mxu0
        %v1055 = vadd.f32 %v967, %v1054
        %v1056 = vpop.f32.mrb[0].mxu0
        %1057 = vdwg.mxu0
        %v1058 = vmax.f32 %v1052, 0.0
        %v1059 = vmax.f32 %v1055, 0.0
        %v1060 = vpack.c.bf16 %v1059, %v1058
        %v1061 = vld [vmem:[#allocation8] sm:$0xf]
        %v1062 = vld [vmem:[#allocation8 + $0x4] sm:$0xf]
        %v1063 = vld [vmem:[#allocation8 + $0x8] sm:$0xf]
        %v1064 = vld [vmem:[#allocation8 + $0xc] sm:$0xf]
        %v1065 = vld [vmem:[#allocation8 + $0x10] sm:$0xf]
        %v1066 = vld [vmem:[#allocation8 + $0x14] sm:$0xf]
        %v1067 = vld [vmem:[#allocation8 + $0x18] sm:$0xf]
        %v1068 = vld [vmem:[#allocation8 + $0x1c] sm:$0xf]
        %v1069 = vld [vmem:[#allocation8 + $0x20] sm:$0xf]
        %v1070 = vld [vmem:[#allocation8 + $0x24] sm:$0xf]
        %v1071 = vld [vmem:[#allocation8 + $0x28] sm:$0xf]
        %v1072 = vld [vmem:[#allocation8 + $0x2c] sm:$0xf]
        %v1073 = vld [vmem:[#allocation8 + $0x30] sm:$0xf]
        %v1074 = vld [vmem:[#allocation8 + $0x34] sm:$0xf]
        %v1075 = vld [vmem:[#allocation8 + $0x38] sm:$0xf]
        %v1076 = vld [vmem:[#allocation8 + $0x3c] sm:$0xf]
        %v1077 = vld [vmem:[%s6] sm:$0x1]
        %v1079 = vlaneseq
        %v1080 = vshrl.u32 %v1079, 7
        %v1081 = vsub.s32 0, %v1080
        %v1082 = vrot.slane %v1077, %v1081
        %v1100 = vunpack.c.l.b16 %v1061
        %v1101 = vunpack.c.l.b16 %v1062
        %v1102 = vunpack.c.l.b16 %v1063
        %v1103 = vunpack.c.l.b16 %v1064
        %v1104 = vunpack.c.l.b16 %v1065
        %v1105 = vunpack.c.l.b16 %v1066
        %v1106 = vunpack.c.l.b16 %v1067
        %v1107 = vunpack.c.l.b16 %v1068
        %v1108 = vunpack.c.l.b16 %v1069
        %v1109 = vunpack.c.l.b16 %v1070
        %v1110 = vunpack.c.l.b16 %v1071
        %v1111 = vunpack.c.l.b16 %v1072
        %v1112 = vunpack.c.l.b16 %v1073
        %v1113 = vunpack.c.l.b16 %v1074
        %v1114 = vunpack.c.l.b16 %v1075
        %v1115 = vunpack.c.l.b16 %v1076
        %v1116 = vpack.c.b16 %v1101, %v1100
        %v1117 = vpack.c.b16 %v1103, %v1102
        %v1118 = vpack.c.b16 %v1105, %v1104
        %v1119 = vpack.c.b16 %v1107, %v1106
        %v1120 = vpack.c.b16 %v1109, %v1108
        %v1121 = vpack.c.b16 %v1111, %v1110
        %v1122 = vpack.c.b16 %v1113, %v1112
        %v1123 = vpack.c.b16 %v1115, %v1114
        %1132 = vmatprep.subr.bf16.mxu0 0
        %1133 = vmatpush1.bf16.msra.mxu0 %v1116
        %1134 = vmatprep.subr.bf16.mxu0 0
        %1135 = vmatpush1.bf16.msra.mxu0 %v1117
        %1136 = vmatprep.subr.bf16.mxu0 0
        %1137 = vmatpush1.bf16.msra.mxu0 %v1118
        %1138 = vmatprep.subr.bf16.mxu0 0
        %1139 = vmatpush1.bf16.msra.mxu0 %v1119
        %1140 = vmatprep.subr.bf16.mxu0 0
        %1141 = vmatpush1.bf16.msra.mxu0 %v1120
        %1142 = vmatprep.subr.bf16.mxu0 0
        %1143 = vmatpush1.bf16.msra.mxu0 %v1121
        %1144 = vmatprep.subr.bf16.mxu0 0
        %1145 = vmatpush1.bf16.msra.mxu0 %v1122
        %1146 = vmatprep.subr.bf16.mxu0 0
        %1147 = vmatpush1.bf16.msra.mxu0 %v1123
        %1148 = vmatprep.subr.bf16.mxu0 0
        %1149 = vmatpush1.bf16.msra.mxu0 0
        %1150 = vmatprep.subr.bf16.mxu0 0
        %1151 = vmatpush1.bf16.msra.mxu0 0
        %1152 = vmatprep.subr.bf16.mxu0 0
        %1153 = vmatpush1.bf16.msra.mxu0 0
        %1154 = vmatprep.subr.bf16.mxu0 0
        %1155 = vmatpush1.bf16.msra.mxu0 0
        %1156 = vmatprep.subr.bf16.mxu0 0
        %1157 = vmatpush1.bf16.msra.mxu0 0
        %1158 = vmatprep.subr.bf16.mxu0 0
        %1159 = vmatpush1.bf16.msra.mxu0 0
        %1160 = vmatprep.subr.bf16.mxu0 0
        %1161 = vmatpush1.bf16.msra.mxu0 0
        %1162 = vmatprep.subr.bf16.mxu0 0
        %1163 = vmatpush1.bf16.msra.mxu0 0
        %1164 = vmatprep.mubr.bf16.mxu0 0
        %1165 = vmatmul.mubr.bf16.gmra.mrb[0].mxu0 %v1060
        %v1166 = vpop.f32.mrb[0].mxu0
        %v1167 = vadd.f32 %v1082, %v1166
        %v1168 = vpop.f32.mrb[0].mxu0
        %v1169 = vpop.f32.mrb[0].mxu0
        %v1170 = vadd.f32 %v1082, %v1169
        %v1171 = vpop.f32.mrb[0].mxu0
        %1172 = vdwg.mxu0
        %1173 = vst [vmem:[%s379] sm:$0xff] %v1167
        %1174 = vst [vmem:[%s379 + $0x8] sm:$0xff] %v1170
        %s1175 = sand.u32 %s191, 1
        %s1176 = scalar_lea.sflag [#allocation4], %s1175
        %s1177 = sand.u32 %s191, 1
        %s1178 = smul.addr %s1177, 8
        %s1179 = scalar_lea.vmem [#allocation10], %s1178
        %s1180 = sand.u32 %s217, 1
        %s1181 = scalar_lea.sflag [#allocation12], %s1180
        %s1182 = sand.u32 %s217, 1
        %s1183 = smul.addr %s1182, 16
        %s1184 = scalar_lea.vmem [#allocation11], %s1183
        // Predicated region
        $region65: #{tpu_custom_call.1} parent=47 // pred_check
          %p1185 = pneg %p201
        $region66: #{tpu_custom_call.1} parent=47 // pred_check_branch
          %1187 = sbr.rel (%p1185) target = $region68
        $region67: #{tpu_custom_call.1} parent=47 // pred_region
          %s1188 = smul.u32 2, %s31
          %s1190 = ssub.s32 128, 128
          %1191 = vsyncadd %s1176, %s1190
          %s1192 = smul.addr %s1188, 64
          %s1193 = scalar_lea.hbm %s7, %s1192
          %s1194 = sshll.u32 %s1179, 4
          %s1195 = int_to_ptr.vmem [resolvable:$true] %s1194
          %1200 = dma.vmem_to_hbm [thread:$0]  %s1195, 128, %s1193, %s1176, 64, 64, 4
        $region68: #{tpu_custom_call.1} parent=47 // pred_fallthru
          _
        // Predicated region
        $region69: #{tpu_custom_call.1} parent=47 // pred_check
          %p1201 = pneg %p227
        $region70: #{tpu_custom_call.1} parent=47 // pred_check_branch
          %1203 = sbr.rel (%p1201) target = $region72
        $region71: #{tpu_custom_call.1} parent=47 // pred_region
          %s1204 = smul.u32 2, %s31
          %s1206 = ssub.s32 256, 256
          %1207 = vsyncadd %s1181, %s1206
          %s1208 = smul.addr %s1204, 128
          %s1209 = scalar_lea.hbm %s8, %s1208
          %s1210 = sshll.u32 %s1184, 4
          %s1211 = int_to_ptr.vmem [resolvable:$true] %s1210
          %1216 = dma.vmem_to_hbm [thread:$0]  %s1211, 256, %s1209, %s1181, 128, 128, 8
        $region72: #{tpu_custom_call.1} parent=47 // pred_fallthru
          _
      $region48: #{tpu_custom_call.1} parent=5 // pred_fallthru
        _
      %p1217 = scmp.le.s32.totalorder 2, %s26
      // Predicated region
      $region73: #{tpu_custom_call.1} parent=5 // pred_check
        %p1218 = pneg %p1217
      $region74: #{tpu_custom_call.1} parent=5 // pred_check_branch
        %1220 = sbr.rel (%p1218) target = $region76
      $region75: #{tpu_custom_call.1} parent=5 // pred_region
        %s1221 = ssub.s32 %s26, 2
        // Predicated region
        $region77: #{tpu_custom_call.1} parent=75 // pred_check
          %p1222 = pneg %p207
        $region78: #{tpu_custom_call.1} parent=75 // pred_check_branch
          %1224 = sbr.rel (%p1222) target = $region80
        $region79: #{tpu_custom_call.1} parent=75 // pred_region
          %s1225 = sand.u32 %s192, 1
          %s1226 = scalar_lea.sflag [#allocation4], %s1225
          %s1227 = sand.u32 %s192, 1
          %s1228 = smul.addr %s1227, 8
          %s1229 = scalar_lea.vmem [#allocation10], %s1228
          %1230 = dma.done %s1226, 128
        $region80: #{tpu_custom_call.1} parent=75 // pred_fallthru
          _
        // Predicated region
        $region81: #{tpu_custom_call.1} parent=75 // pred_check
          %p1231 = pneg %p233
        $region82: #{tpu_custom_call.1} parent=75 // pred_check_branch
          %1233 = sbr.rel (%p1231) target = $region84
        $region83: #{tpu_custom_call.1} parent=75 // pred_region
          %s1234 = sand.u32 %s218, 1
          %s1235 = scalar_lea.sflag [#allocation12], %s1234
          %s1236 = sand.u32 %s218, 1
          %s1237 = smul.addr %s1236, 16
          %s1238 = scalar_lea.vmem [#allocation11], %s1237
          %1239 = dma.done %s1235, 256
        $region84: #{tpu_custom_call.1} parent=75 // pred_fallthru
          _
      $region76: #{tpu_custom_call.1} parent=5 // pred_fallthru
        _
    $region6: #{tpu_custom_call.1} parent=1 // loop_footer
      %s30 = sadd.s32 1, %s26
    $region7: #{tpu_custom_call.1} parent=1 // loop_footer_branch
      %25 = sbr.rel target = $region3
    $region8: #{tpu_custom_call.1} parent=1 // loop_exit
      _
    %1240 = vsyncpa [#allocation3], 1
    %s1241 = scalar_lea.sflag [#allocation3], 1
    %1242 = vsyncpa %s1241, 1
    %1243 = vsyncpa [#allocation6], 1
    %1244 = vsyncpa [#allocation9], 1
    %1245 = vsyncpa [#allocation4], 1
    %s1246 = scalar_lea.sflag [#allocation4], 1
    %1247 = vsyncpa %s1246, 1
    %1248 = vsyncpa [#allocation12], 1
    %s1249 = scalar_lea.sflag [#allocation12], 1
    %1250 = vsyncpa %s1249, 1

</llo_original>
